<compile_context>
chip_gen: v7x
topology: tpu7x:2x2x1
jax: 0.10.0
libtpu: 0.0.40
codegen_flags: <defaults>
</compile_context>

<pallas_src>
import jax
import jax.numpy as jnp
from jax import lax
from jax.experimental import pallas as pl
from jax.experimental.pallas import tpu as pltpu


def text_proj_norm_kernel(t_ref, w_ref, o_ref):
    """Text head tile: projection (no bias) + row-wise L2 normalize.

    t_ref : (TM, 512)  fp32 pooled CLIP text features (tile of rows)
    w_ref : (512, D)   fp32 projection weight (stored transposed: x @ W.T)
    o_ref : (TM, D)    bf16 normalized text features
    """
    t = t_ref[...].astype(jnp.bfloat16)
    w = w_ref[...].astype(jnp.bfloat16)
    feat = jnp.dot(t, w, preferred_element_type=jnp.float32)        # MXU, f32 acc
    ssq = jnp.sum(feat * feat, axis=-1, keepdims=True)              # fp32 stats
    o_ref[...] = (feat * lax.rsqrt(ssq)).astype(o_ref.dtype)


def img_norm_logits_kernel(scale_ref, img_ref, txt_ref, o_ref):
    """Image tile: L2 normalize + scaled similarity against all text features.

    scale_ref : (1,)        fp32 exp(logit_scale) in SMEM
    img_ref   : (TM, D)     fp32 image features (tile of rows)
    txt_ref   : (B_txt, D)  bf16 normalized text features (resident all tiles)
    o_ref     : (TM, B_txt) fp32 logits
    """
    x = img_ref[...].astype(jnp.float32)
    ssq = jnp.sum(x * x, axis=-1, keepdims=True)
    # Fold exp(logit_scale) into the per-row normalization factor: cheaper than
    # scaling the (TM, B_txt) logits tile afterwards.
    xn = (x * (lax.rsqrt(ssq) * scale_ref[0])).astype(jnp.bfloat16)
    t = txt_ref[...]                                                # bf16
    # xn @ t.T without an explicit transpose (MXU trans_b form), f32 accumulate.
    o_ref[...] = lax.dot_general(xn, t, (((1,), (1,)), ((), ())),
                                 preferred_element_type=jnp.float32)


def _pad_rows(x, multiple, fill=1.0):
    """Pad axis 0 up to a multiple; pad rows filled with `fill` (norm-safe)."""
    rows = x.shape[0]
    padded = pl.cdiv(rows, multiple) * multiple
    if padded == rows:
        return x
    pad = jnp.full((padded - rows,) + x.shape[1:], fill, x.dtype)
    return jnp.concatenate([x, pad], axis=0)


def project_and_normalize_text(text_pooled, w_proj, *, tile_rows=32):
    """text_projection(pooler_output) followed by L2 normalization (bf16 out)."""
    B, K = text_pooled.shape
    D = w_proj.shape[1]
    tm = min(tile_rows, B)
    assert B % tm == 0
    return pl.pallas_call(
        text_proj_norm_kernel,
        out_shape=jax.ShapeDtypeStruct((B, D), jnp.bfloat16),
        grid=(B // tm,),
        in_specs=[
            pl.BlockSpec((tm, K), lambda i: (i, 0)),
            pl.BlockSpec((K, D), lambda i: (0, 0)),   # weight resident across tiles
        ],
        out_specs=pl.BlockSpec((tm, D), lambda i: (i, 0)),
        compiler_params=pltpu.CompilerParams(
            dimension_semantics=("parallel",)),
    )(text_pooled, w_proj)


def image_text_logits(image_feat, text_feat_n, logit_scale, *, tile_rows=32):
    """Normalize image features and compute exp(logit_scale) * img_n @ txt_n.T."""
    Bi, D = image_feat.shape
    Bt = text_feat_n.shape[0]
    tm = min(tile_rows, Bi)
    assert Bi % tm == 0
    scale = jnp.exp(logit_scale).reshape((1,)).astype(jnp.float32)
    return pl.pallas_call(
        img_norm_logits_kernel,
        out_shape=jax.ShapeDtypeStruct((Bi, Bt), jnp.float32),
        grid=(Bi // tm,),
        in_specs=[
            pl.BlockSpec(memory_space=pltpu.MemorySpace.SMEM),       # scalar scale
            pl.BlockSpec((tm, D), lambda i: (i, 0)),
            pl.BlockSpec((Bt, D), lambda i: (0, 0)),  # text feats resident
        ],
        out_specs=pl.BlockSpec((tm, Bt), lambda i: (i, 0)),
        compiler_params=pltpu.CompilerParams(
            dimension_semantics=("parallel",)),
    )(scale, image_feat, text_feat_n)


@jax.jit
def vlm_head_forward(image_feat, text_pooled, w_proj, logit_scale):
    """VLM.forward (embedding=False path) given the backbone outputs."""
    Bi = image_feat.shape[0]
    Bt = text_pooled.shape[0]
    # Pad to tile multiples (image rows -> 32, text rows -> 128 so the logits
    # output last dim stays lane-dense / unmasked-store).  Pad rows are filled
    # with 1.0 so L2 normalization never divides by zero; padded outputs are
    # sliced away below.
    image_feat_p = _pad_rows(image_feat, 32)
    text_pooled_p = _pad_rows(text_pooled, 128)
    text_feat_n = project_and_normalize_text(text_pooled_p, w_proj)
    logits = image_text_logits(image_feat_p, text_feat_n, logit_scale)
    return logits[:Bi, :Bt]


if __name__ == "__main__":
    key = jax.random.PRNGKey(0)
    k1, k2, k3 = jax.random.split(key, 3)

    B_IMG, B_TXT = 64, 128          # lane-dense logits: last dim = 128
    EMBED_DIM, TXT_DIM = 768, 512   # ResNet fc -> 768; CLIP text hidden = 512

    # TODO(synk): pretrained ResNet-50 image encoder, CLIP text transformer and
    # the CLIP tokenizer/processor are external backbones; their outputs are
    # synthesized here as the kernel inputs.
    image_feat = jax.random.normal(k1, (B_IMG, EMBED_DIM), jnp.float32)
    text_pooled = jax.random.normal(k2, (B_TXT, TXT_DIM), jnp.float32)
    # nn.Linear(512, 768, bias=False).weight is (768, 512); stored transposed
    # so the kernel computes x @ W.T as a plain (B,512)x(512,768) matmul.
    w_proj = (jax.random.normal(k3, (TXT_DIM, EMBED_DIM), jnp.float32)
              / jnp.sqrt(TXT_DIM))
    logit_scale = jnp.asarray(jnp.log(1.0 / 0.07), jnp.float32)

    logits = vlm_head_forward(image_feat, text_pooled, w_proj, logit_scale)
    jax.block_until_ready(logits)

    # Pure-JAX fp32 reference of the same forward math.
    txt_ref = text_pooled @ w_proj
    txt_ref = txt_ref / jnp.linalg.norm(txt_ref, axis=1, keepdims=True)
    img_ref = image_feat / jnp.linalg.norm(image_feat, axis=1, keepdims=True)
    ref = jnp.exp(logit_scale) * img_ref @ txt_ref.T

    assert logits.shape == (B_IMG, B_TXT)
    assert bool(jnp.all(jnp.isfinite(logits)))
    max_err = float(jnp.max(jnp.abs(logits - ref)))
    assert max_err < 0.1, max_err   # bf16 MXU inputs, fp32 accumulation
    print("KERNEL_OK")
</pallas_src>

<mosaic_0001>
module attributes {stable_mosaic.version = 11 : i64} {
  func.func @text_proj_norm_kernel(%arg0: i32, %arg1: memref<32x512xf32, #tpu.memory_space<vmem>>, %arg2: memref<512x768xf32, #tpu.memory_space<vmem>>, %arg3: memref<32x768xbf16, #tpu.memory_space<vmem>>) attributes {dimension_semantics = [#tpu.dimension_semantics<parallel>], iteration_bounds = array<i64: 4>, scalar_prefetch = 0 : i64, scratch_operands = 0 : i64, tpu.core_type = #tpu.core_type<tc>, window_params = [{transform_indices = @transform_0, window_bounds = array<i64: 32, 512>}, {pipeline_mode = #tpu.pipeline_mode<synchronous>, transform_indices = @transform_1, window_bounds = array<i64: 512, 768>}, {transform_indices = @transform_2, window_bounds = array<i64: 32, 768>}]} {
    %c0 = arith.constant 0 : index
    %c0_0 = arith.constant 0 : index
    %0 = vector.load %arg1[%c0, %c0_0] : memref<32x512xf32, #tpu.memory_space<vmem>>, vector<32x512xf32>
    %1 = arith.truncf %0 : vector<32x512xf32> to vector<32x512xbf16>
    %c0_1 = arith.constant 0 : index
    %c0_2 = arith.constant 0 : index
    %2 = vector.load %arg2[%c0_1, %c0_2] : memref<512x768xf32, #tpu.memory_space<vmem>>, vector<512x768xf32>
    %3 = arith.truncf %2 : vector<512x768xf32> to vector<512x768xbf16>
    %cst = arith.constant dense<0.000000e+00> : vector<32x768xf32>
    %4 = tpu.matmul %1, %3, %cst {dimension_numbers = #tpu.dot_dimension_numbers<[1], [0], [0], [1], [0, 0, 1, 1], [], []>} : vector<32x512xbf16>, vector<512x768xbf16>, vector<32x768xf32> -> vector<32x768xf32>
    %5 = arith.mulf %4, %4 : vector<32x768xf32>
    %cst_3 = arith.constant dense<0.000000e+00> : vector<32xf32>
    %6 = vector.multi_reduction <add>, %5, %cst_3 [1] : vector<32x768xf32> to vector<32xf32>
    %7 = vector.shape_cast %6 : vector<32xf32> to vector<32x1xf32>
    %8 = math.rsqrt %7 : vector<32x1xf32>
    %9 = vector.broadcast %8 : vector<32x1xf32> to vector<32x768xf32>
    %10 = arith.mulf %4, %9 : vector<32x768xf32>
    %11 = arith.truncf %10 : vector<32x768xf32> to vector<32x768xbf16>
    %c0_4 = arith.constant 0 : index
    %c0_5 = arith.constant 0 : index
    %12 = vector.load %arg3[%c0_4, %c0_5] : memref<32x768xbf16, #tpu.memory_space<vmem>>, vector<32x768xbf16>
    tpu.vector_store %arg3[%c0_4, %c0_5], %11 {strides = array<i32>} : memref<32x768xbf16, #tpu.memory_space<vmem>>, vector<32x768xbf16>,
    return
  }
  func.func @transform_0(%arg0: i32) -> (i32, i32) {
    %c0_i32 = arith.constant 0 : i32
    %c0_i32_0 = arith.constant 0 : i32
    return %arg0, %c0_i32 : i32, i32
  }
  func.func @transform_1(%arg0: i32) -> (i32, i32) {
    %c0_i32 = arith.constant 0 : i32
    %c0_i32_0 = arith.constant 0 : i32
    %c0_i32_1 = arith.constant 0 : i32
    return %c0_i32, %c0_i32_0 : i32, i32
  }
  func.func @transform_2(%arg0: i32) -> (i32, i32) {
    %c0_i32 = arith.constant 0 : i32
    %c0_i32_0 = arith.constant 0 : i32
    return %arg0, %c0_i32 : i32, i32
  }
}

module attributes {stable_mosaic.version = 11 : i64} {
  func.func @img_norm_logits_kernel(%arg0: i32, %arg1: memref<1xf32, #tpu.memory_space<smem>>, %arg2: memref<32x768xf32, #tpu.memory_space<vmem>>, %arg3: memref<128x768xbf16, #tpu.memory_space<vmem>>, %arg4: memref<32x128xf32, #tpu.memory_space<vmem>>) attributes {dimension_semantics = [#tpu.dimension_semantics<parallel>], iteration_bounds = array<i64: 2>, scalar_prefetch = 0 : i64, scratch_operands = 0 : i64, tpu.core_type = #tpu.core_type<tc>, window_params = [{transform_indices = @transform_0, window_bounds = array<i64: 1>}, {transform_indices = @transform_1, window_bounds = array<i64: 32, 768>}, {pipeline_mode = #tpu.pipeline_mode<synchronous>, transform_indices = @transform_2, window_bounds = array<i64: 128, 768>}, {transform_indices = @transform_3, window_bounds = array<i64: 32, 128>}]} {
    %c0 = arith.constant 0 : index
    %c0_0 = arith.constant 0 : index
    %0 = vector.load %arg2[%c0, %c0_0] : memref<32x768xf32, #tpu.memory_space<vmem>>, vector<32x768xf32>
    %1 = arith.mulf %0, %0 : vector<32x768xf32>
    %cst = arith.constant dense<0.000000e+00> : vector<32xf32>
    %2 = vector.multi_reduction <add>, %1, %cst [1] : vector<32x768xf32> to vector<32xf32>
    %3 = vector.shape_cast %2 : vector<32xf32> to vector<32x1xf32>
    %4 = math.rsqrt %3 : vector<32x1xf32>
    %c0_1 = arith.constant 0 : index
    %5 = memref.load %arg1[%c0_1] : memref<1xf32, #tpu.memory_space<smem>>
    %6 = vector.broadcast %5 : f32 to vector<32x1xf32>
    %7 = arith.mulf %4, %6 : vector<32x1xf32>
    %8 = vector.broadcast %7 : vector<32x1xf32> to vector<32x768xf32>
    %9 = arith.mulf %0, %8 : vector<32x768xf32>
    %10 = arith.truncf %9 : vector<32x768xf32> to vector<32x768xbf16>
    %c0_2 = arith.constant 0 : index
    %c0_3 = arith.constant 0 : index
    %11 = vector.load %arg3[%c0_2, %c0_3] : memref<128x768xbf16, #tpu.memory_space<vmem>>, vector<128x768xbf16>
    %cst_4 = arith.constant dense<0.000000e+00> : vector<32x128xf32>
    %12 = tpu.matmul %10, %11, %cst_4 {dimension_numbers = #tpu.dot_dimension_numbers<[1], [1], [0], [0], [0, 0, 1, 0], [], []>} : vector<32x768xbf16>, vector<128x768xbf16>, vector<32x128xf32> -> vector<32x128xf32>
    %c0_5 = arith.constant 0 : index
    %c0_6 = arith.constant 0 : index
    %13 = vector.load %arg4[%c0_5, %c0_6] : memref<32x128xf32, #tpu.memory_space<vmem>>, vector<32x128xf32>
    tpu.vector_store %arg4[%c0_5, %c0_6], %12 {strides = array<i32>} : memref<32x128xf32, #tpu.memory_space<vmem>>, vector<32x128xf32>,
    return
  }
  func.func @transform_0(%arg0: i32) -> i32 {
    %c0_i32 = arith.constant 0 : i32
    %c0_i32_0 = arith.constant 0 : i32
    return %c0_i32 : i32
  }
  func.func @transform_1(%arg0: i32) -> (i32, i32) {
    %c0_i32 = arith.constant 0 : i32
    %c0_i32_0 = arith.constant 0 : i32
    return %arg0, %c0_i32 : i32, i32
  }
  func.func @transform_2(%arg0: i32) -> (i32, i32) {
    %c0_i32 = arith.constant 0 : i32
    %c0_i32_0 = arith.constant 0 : i32
    %c0_i32_1 = arith.constant 0 : i32
    return %c0_i32, %c0_i32_0 : i32, i32
  }
  func.func @transform_3(%arg0: i32) -> (i32, i32) {
    %c0_i32 = arith.constant 0 : i32
    %c0_i32_0 = arith.constant 0 : i32
    return %arg0, %c0_i32 : i32, i32
  }
}

</mosaic_0001>

<llo_original>
// kernel: vlm_head_forward.3
$region0: #{vlm_head_forward.3}
  #allocation0 [shape = 'u32[]', space=smem, size = 0x4, offset = 0x4, fixed_abs, tag = 'smem constant byte address 0x4 - core index']
  #allocation1 [shape = 'u32[144,128]{1,0:T(1,128)}', space=vmem, size = 0x12000, scoped, tag = 'internal scratch']
  #allocation2 [shape = 'f32[1]{0:T(128)S(6)}', space=smem, size = 0x200, scoped, tag = 'scoped memory for vlm_head_forward.3']
  %s0 = inlined_call_operand.<no memory space> [shape: f32[1], index: 0, kind: input, shape index: {}]
  %s1 = inlined_call_operand.vmem [shape: f32[64,768], index: 1, kind: input, shape index: {}]
  %s2 = inlined_call_operand.vmem [shape: bf16[128,768], index: 2, kind: input, shape index: {}]
  %s3 = inlined_call_operand.hbm [shape: f32[64,128], index: 3, kind: output, shape index: {}]
  %s4 = sld [smem:[#allocation0]]
  $region45: #{vlm_head_forward.3} parent=0
    _
  %s6 = ssub.s32 1, %s4
  %s7 = scalar_select 0, %s6, %s4
  %8 = sst [smem:[#allocation2]] %s0
  $region1: #{vlm_head_forward.3} parent=0
    #allocation3 [shape = 'u8[32768]{0}', space=vmem, size = 0x8000, scoped, tag = 'output window, operand 0']
    #allocation4 [shape = 's32[2]{0}', space=sflag, size = 0x8, scoped, tag = 'scoped memory for vlm_head_forward.3']
    %9 = vsyncpa [#allocation4], 0
    %s10 = scalar_lea.sflag [#allocation4], 1
    %11 = vsyncpa %s10, 0
    loop: start=0, step=1, limit=4
    $region2: #{vlm_head_forward.3} parent=1 // loop_pre_header
      _
    $region3: #{vlm_head_forward.3} parent=1 // loop_header
      %s13 = sphi 0, %s17
      %p14 = scmp.ge.s32.totalorder %s13, 4
      %s21 = sphi 0, %s21
      %s23 = sphi 0, %s21
      %s24 = sphi 0, %s23
      %s38 = sphi 0, %s24
      %s44 = sphi 0, %s46
      %s47 = sphi 0, %s44
      %s48 = sphi 0, %s47
      %s64 = sphi 0, %s48
      %s68 = sphi 0, %s68
      %s70 = sphi 0, %s68
      %s71 = sphi 0, %s70
      %s85 = sphi 0, %s71
      %s91 = sphi 0, %s93
      %s94 = sphi 0, %s91
      %s95 = sphi 0, %s94
      %s111 = sphi 0, %s95
    $region4: #{vlm_head_forward.3} parent=1 // loop_header_branch
      %16 = sbr.rel (%p14) target = $region8
    $region5: #{vlm_head_forward.3} parent=1 // loop_body
      %s18 = ssub.s32 %s13, 1
      %s19 = ssub.s32 %s13, 2
      %s20 = sadd.s32 %s13, 1
      %s22 = sadd.s32 %s21, 1
      %p25 = scmp.eq.s32.totalorder %s13, 1
      %p26 = scmp.ne.s32.totalorder %s21, %s23
      %p27 = scmp.eq.s32.totalorder %s13, 0
      %p28 = por %p26, %p27
      %p29 = scmp.ne.s32.totalorder %s21, %s23
      %p30 = scmp.eq.s32.totalorder %s18, 1
      %p31 = por %p29, %p30
      %p32 = scmp.ne.s32.totalorder %s23, %s24
      %p33 = scmp.eq.s32.totalorder %s18, 0
      %p34 = por %p32, %p33
      %p35 = scmp.ne.s32.totalorder %s23, %s24
      %p36 = scmp.eq.s32.totalorder %s19, 1
      %p37 = por %p35, %p36
      %p39 = scmp.ne.s32.totalorder %s24, %s38
      %p40 = scmp.eq.s32.totalorder %s19, 0
      %p41 = por %p39, %p40
      %s42 = ssub.s32 %s13, %s20
      %p43 = scmp.eq.s32.totalorder %s42, 0
      %s45 = sadd.s32 %s44, 1
      %s46 = scalar_select %p43, %s44, %s45
      %p49 = pneg %p43
      %p50 = scmp.eq.s32.totalorder %s13, 1
      %p51 = por %p49, %p50
      %p52 = scmp.ne.s32.totalorder %s44, %s47
      %p53 = scmp.eq.s32.totalorder %s13, 0
      %p54 = por %p52, %p53
      %p55 = scmp.ne.s32.totalorder %s44, %s47
      %p56 = scmp.eq.s32.totalorder %s18, 1
      %p57 = por %p55, %p56
      %p58 = scmp.ne.s32.totalorder %s47, %s48
      %p59 = scmp.eq.s32.totalorder %s18, 0
      %p60 = por %p58, %p59
      %p61 = scmp.ne.s32.totalorder %s47, %s48
      %p62 = scmp.eq.s32.totalorder %s19, 1
      %p63 = por %p61, %p62
      %p65 = scmp.ne.s32.totalorder %s48, %s64
      %p66 = scmp.eq.s32.totalorder %s19, 0
      %p67 = por %p65, %p66
      %s69 = sadd.s32 %s68, 1
      %p72 = scmp.eq.s32.totalorder %s13, 1
      %p73 = scmp.ne.s32.totalorder %s68, %s70
      %p74 = scmp.eq.s32.totalorder %s13, 0
      %p75 = por %p73, %p74
      %p76 = scmp.ne.s32.totalorder %s68, %s70
      %p77 = scmp.eq.s32.totalorder %s18, 1
      %p78 = por %p76, %p77
      %p79 = scmp.ne.s32.totalorder %s70, %s71
      %p80 = scmp.eq.s32.totalorder %s18, 0
      %p81 = por %p79, %p80
      %p82 = scmp.ne.s32.totalorder %s70, %s71
      %p83 = scmp.eq.s32.totalorder %s19, 1
      %p84 = por %p82, %p83
      %p86 = scmp.ne.s32.totalorder %s71, %s85
      %p87 = scmp.eq.s32.totalorder %s19, 0
      %p88 = por %p86, %p87
      %s89 = ssub.s32 %s13, %s20
      %p90 = scmp.eq.s32.totalorder %s89, 0
      %s92 = sadd.s32 %s91, 1
      %s93 = scalar_select %p90, %s91, %s92
      %p96 = pneg %p90
      %p97 = scmp.eq.s32.totalorder %s13, 1
      %p98 = por %p96, %p97
      %p99 = scmp.ne.s32.totalorder %s91, %s94
      %p100 = scmp.eq.s32.totalorder %s13, 0
      %p101 = por %p99, %p100
      %p102 = scmp.ne.s32.totalorder %s91, %s94
      %p103 = scmp.eq.s32.totalorder %s18, 1
      %p104 = por %p102, %p103
      %p105 = scmp.ne.s32.totalorder %s94, %s95
      %p106 = scmp.eq.s32.totalorder %s18, 0
      %p107 = por %p105, %p106
      %p108 = scmp.ne.s32.totalorder %s94, %s95
      %p109 = scmp.eq.s32.totalorder %s19, 1
      %p110 = por %p108, %p109
      %p112 = scmp.ne.s32.totalorder %s95, %s111
      %p113 = scmp.eq.s32.totalorder %s19, 0
      %p114 = por %p112, %p113
      %p115 = scmp.le.s32.totalorder 1, %s13
      %p116 = scmp.lt.s32.totalorder %s13, 3
      %p117 = pnand %p115, %p116
      %p118 = pneg %p117
      // Predicated region
      $region9: #{vlm_head_forward.3} parent=5 // pred_check
        _
      $region10: #{vlm_head_forward.3} parent=5 // pred_check_branch
        %120 = sbr.rel (%p117) target = $region12
      $region11: #{vlm_head_forward.3} parent=5 // pred_region
        %s121 = ssub.s32 %s13, 1
        // Predicated region
        $region13: #{vlm_head_forward.3} parent=11 // pred_check
          %p122 = pneg %p34
        $region14: #{vlm_head_forward.3} parent=11 // pred_check_branch
          %124 = sbr.rel (%p122) target = $region16
        $region15: #{vlm_head_forward.3} parent=11 // pred_region
          _
        $region16: #{vlm_head_forward.3} parent=11 // pred_fallthru
          _
        // Predicated region
        $region17: #{vlm_head_forward.3} parent=11 // pred_check
          %p125 = pneg %p81
        $region18: #{vlm_head_forward.3} parent=11 // pred_check_branch
          %127 = sbr.rel (%p125) target = $region20
        $region19: #{vlm_head_forward.3} parent=11 // pred_region
          _
        $region20: #{vlm_head_forward.3} parent=11 // pred_fallthru
          _
      $region12: #{vlm_head_forward.3} parent=5 // pred_fallthru
        _
      %p128 = scmp.lt.s32.totalorder %s13, 2
      // Predicated region
      $region21: #{vlm_head_forward.3} parent=5 // pred_check
        %p129 = pneg %p128
      $region22: #{vlm_head_forward.3} parent=5 // pred_check_branch
        %131 = sbr.rel (%p129) target = $region24
      $region23: #{vlm_head_forward.3} parent=5 // pred_region
        // Predicated region
        $region25: #{vlm_head_forward.3} parent=23 // pred_check
          %p132 = pneg %p54
        $region26: #{vlm_head_forward.3} parent=23 // pred_check_branch
          %134 = sbr.rel (%p132) target = $region28
        $region27: #{vlm_head_forward.3} parent=23 // pred_region
          %s135 = smul.u32 4, %s13
          %p136 = scmp.lt.s32.totalorder %s135, 7
          %s137 = scalar_select %p136, %s135, 7
          %s138 = smul.addr %s137, 6
          %s139 = smul.addr %s138, 8
          %s140 = scalar_lea.vmem %s1, %s139
          %s141 = smul.u32 4, %s13
        $region28: #{vlm_head_forward.3} parent=23 // pred_fallthru
          _
      $region24: #{vlm_head_forward.3} parent=5 // pred_fallthru
        _
      %p142 = scmp.le.s32.totalorder 1, %s13
      %p143 = scmp.lt.s32.totalorder %s13, 3
      %p144 = pnand %p142, %p143
      %p145 = pneg %p144
      // Predicated region
      $region29: #{vlm_head_forward.3} parent=5 // pred_check
        _
      $region30: #{vlm_head_forward.3} parent=5 // pred_check_branch
        %147 = sbr.rel (%p144) target = $region32
      $region31: #{vlm_head_forward.3} parent=5 // pred_region
        %s148 = ssub.s32 %s13, 1
        %p149 = pneg %p34
        %p150 = pneg %p31
        %s151 = smul.u32 4, %s18
        %p152 = scmp.lt.s32.totalorder %s151, 7
        %s153 = scalar_select %p152, %s151, 7
        %s154 = smul.addr %s153, 6
        %s155 = smul.addr %s154, 8
        %s156 = scalar_lea.vmem %s1, %s155
        %p157 = pneg %p60
        %p158 = pneg %p57
        %p159 = pneg %p81
        %p160 = pneg %p78
        %p161 = pneg %p107
        %p162 = pneg %p104
        %s163 = sand.u32 %s94, 1
        %s164 = scalar_lea.sflag [#allocation4], %s163
        %s165 = sand.u32 %s94, 1
        %s166 = smul.addr %s165, 32
        %s167 = scalar_lea.vmem [#allocation3], %s166
        %s168 = smul.u32 4, %s18
        %p169 = scmp.lt.s32.totalorder %s168, 7
        %s170 = scalar_select %p169, %s168, 7
        %s171 = smul.addr %s170, 6
        %s172 = smul.addr %s171, 8
        %s173 = scalar_lea.vmem %s1, %s172
        %s174 = smul.u32 4, %s18
        %s175 = smul.u32 4, %s18
        %v177 = vld [vmem:[%s173] sm:$0xff]
        %v178 = vld [vmem:[%s173 + $0x8] sm:$0xff]
        %v179 = vld [vmem:[%s173 + $0x10] sm:$0xff]
        %v180 = vld [vmem:[%s173 + $0x18] sm:$0xff]
        %v181 = vld [vmem:[%s173 + $0x20] sm:$0xff]
        %v182 = vld [vmem:[%s173 + $0x28] sm:$0xff]
        %v183 = vld [vmem:[%s173 + $0x30] sm:$0xff]
        %v184 = vld [vmem:[%s173 + $0x38] sm:$0xff]
        %v185 = vld [vmem:[%s173 + $0x40] sm:$0xff]
        %v186 = vld [vmem:[%s173 + $0x48] sm:$0xff]
        %v187 = vld [vmem:[%s173 + $0x50] sm:$0xff]
        %v188 = vld [vmem:[%s173 + $0x58] sm:$0xff]
        %v189 = vld [vmem:[%s173 + $0x60] sm:$0xff]
        %v190 = vld [vmem:[%s173 + $0x68] sm:$0xff]
        %v191 = vld [vmem:[%s173 + $0x70] sm:$0xff]
        %v192 = vld [vmem:[%s173 + $0x78] sm:$0xff]
        %v193 = vld [vmem:[%s173 + $0x80] sm:$0xff]
        %v194 = vld [vmem:[%s173 + $0x88] sm:$0xff]
        %v195 = vld [vmem:[%s173 + $0x90] sm:$0xff]
        %v196 = vld [vmem:[%s173 + $0x98] sm:$0xff]
        %v197 = vld [vmem:[%s173 + $0xa0] sm:$0xff]
        %v198 = vld [vmem:[%s173 + $0xa8] sm:$0xff]
        %v199 = vld [vmem:[%s173 + $0xb0] sm:$0xff]
        %v200 = vld [vmem:[%s173 + $0xb8] sm:$0xff]
        %v201 = vmul.f32 %v177, %v177
        %v202 = vmul.f32 %v178, %v178
        %v203 = vmul.f32 %v179, %v179
        %v204 = vmul.f32 %v180, %v180
        %v205 = vmul.f32 %v181, %v181
        %v206 = vmul.f32 %v182, %v182
        %v207 = vmul.f32 %v183, %v183
        %v208 = vmul.f32 %v184, %v184
        %v209 = vmul.f32 %v185, %v185
        %v210 = vmul.f32 %v186, %v186
        %v211 = vmul.f32 %v187, %v187
        %v212 = vmul.f32 %v188, %v188
        %v213 = vmul.f32 %v189, %v189
        %v214 = vmul.f32 %v190, %v190
        %v215 = vmul.f32 %v191, %v191
        %v216 = vmul.f32 %v192, %v192
        %v217 = vmul.f32 %v193, %v193
        %v218 = vmul.f32 %v194, %v194
        %v219 = vmul.f32 %v195, %v195
        %v220 = vmul.f32 %v196, %v196
        %v221 = vmul.f32 %v197, %v197
        %v222 = vmul.f32 %v198, %v198
        %v223 = vmul.f32 %v199, %v199
        %v224 = vmul.f32 %v200, %v200
        %v225 = vadd.f32 %v201, %v202
        %v226 = vadd.f32 %v225, %v203
        %v227 = vadd.f32 %v226, %v204
        %v228 = vadd.f32 %v227, %v205
        %v229 = vadd.f32 %v228, %v206
        %230 = vadd.xlane.f32.xlu0 %v229
        %v231 = vpop.xlane.xlu0 %230
        %v232 = vadd.f32 %v207, %v208
        %v233 = vadd.f32 %v232, %v209
        %v234 = vadd.f32 %v233, %v210
        %v235 = vadd.f32 %v234, %v211
        %v236 = vadd.f32 %v235, %v212
        %237 = vadd.xlane.f32.xlu0 %v236
        %v238 = vpop.xlane.xlu0 %237
        %v239 = vadd.f32 %v213, %v214
        %v240 = vadd.f32 %v239, %v215
        %v241 = vadd.f32 %v240, %v216
        %v242 = vadd.f32 %v241, %v217
        %v243 = vadd.f32 %v242, %v218
        %244 = vadd.xlane.f32.xlu0 %v243
        %v245 = vpop.xlane.xlu0 %244
        %v246 = vadd.f32 %v219, %v220
        %v247 = vadd.f32 %v246, %v221
        %v248 = vadd.f32 %v247, %v222
        %v249 = vadd.f32 %v248, %v223
        %v250 = vadd.f32 %v249, %v224
        %251 = vadd.xlane.f32.xlu0 %v250
        %v252 = vpop.xlane.xlu0 %251
        %v253 = vrsqrt.pop %v231
        %v254 = vrsqrt.pop %v238
        %v255 = vrsqrt.pop %v245
        %v256 = vrsqrt.pop %v252
        %s257 = sld [smem:[#allocation2]]
        %v258 = vstv %s257
        %v259 = vmul.f32 %v253, %v258
        %v260 = vmul.f32 %v254, %v258
        %v261 = vmul.f32 %v255, %v258
        %v262 = vmul.f32 %v256, %v258
        %v263 = vmul.f32 %v177, %v259
        %v264 = vmul.f32 %v178, %v259
        %v265 = vmul.f32 %v179, %v259
        %v266 = vmul.f32 %v180, %v259
        %v267 = vmul.f32 %v181, %v259
        %v268 = vmul.f32 %v182, %v259
        %v269 = vmul.f32 %v183, %v260
        %v270 = vmul.f32 %v184, %v260
        %v271 = vmul.f32 %v185, %v260
        %v272 = vmul.f32 %v186, %v260
        %v273 = vmul.f32 %v187, %v260
        %v274 = vmul.f32 %v188, %v260
        %v275 = vmul.f32 %v189, %v261
        %v276 = vmul.f32 %v190, %v261
        %v277 = vmul.f32 %v191, %v261
        %v278 = vmul.f32 %v192, %v261
        %v279 = vmul.f32 %v193, %v261
        %v280 = vmul.f32 %v194, %v261
        %v281 = vmul.f32 %v195, %v262
        %v282 = vmul.f32 %v196, %v262
        %v283 = vmul.f32 %v197, %v262
        %v284 = vmul.f32 %v198, %v262
        %v285 = vmul.f32 %v199, %v262
        %v286 = vmul.f32 %v200, %v262
        %v287 = vpack.c.bf16 %v269, %v263
        %v288 = vpack.c.bf16 %v270, %v264
        %v289 = vpack.c.bf16 %v271, %v265
        %v290 = vpack.c.bf16 %v272, %v266
        %v291 = vpack.c.bf16 %v273, %v267
        %v292 = vpack.c.bf16 %v274, %v268
        %v293 = vpack.c.bf16 %v281, %v275
        %v294 = vpack.c.bf16 %v282, %v276
        %v295 = vpack.c.bf16 %v283, %v277
        %v296 = vpack.c.bf16 %v284, %v278
        %v297 = vpack.c.bf16 %v285, %v279
        %v298 = vpack.c.bf16 %v286, %v280
        %v299 = vld [vmem:[%s2] sm:$0xff]
        %v300 = vld [vmem:[%s2 + $0x8] sm:$0xff]
        %v301 = vld [vmem:[%s2 + $0x10] sm:$0xff]
        %v302 = vld [vmem:[%s2 + $0x18] sm:$0xff]
        %v303 = vld [vmem:[%s2 + $0x20] sm:$0xff]
        %v304 = vld [vmem:[%s2 + $0x28] sm:$0xff]
        %v305 = vld [vmem:[%s2 + $0x30] sm:$0xff]
        %v306 = vld [vmem:[%s2 + $0x38] sm:$0xff]
        %v307 = vld [vmem:[%s2 + $0x40] sm:$0xff]
        %v308 = vld [vmem:[%s2 + $0x48] sm:$0xff]
        %v309 = vld [vmem:[%s2 + $0x50] sm:$0xff]
        %v310 = vld [vmem:[%s2 + $0x58] sm:$0xff]
        %v311 = vld [vmem:[%s2 + $0x60] sm:$0xff]
        %v312 = vld [vmem:[%s2 + $0x68] sm:$0xff]
        %v313 = vld [vmem:[%s2 + $0x70] sm:$0xff]
        %v314 = vld [vmem:[%s2 + $0x78] sm:$0xff]
        %v315 = vld [vmem:[%s2 + $0x80] sm:$0xff]
        %v316 = vld [vmem:[%s2 + $0x88] sm:$0xff]
        %v317 = vld [vmem:[%s2 + $0x90] sm:$0xff]
        %v318 = vld [vmem:[%s2 + $0x98] sm:$0xff]
        %v319 = vld [vmem:[%s2 + $0xa0] sm:$0xff]
        %v320 = vld [vmem:[%s2 + $0xa8] sm:$0xff]
        %v321 = vld [vmem:[%s2 + $0xb0] sm:$0xff]
        %v322 = vld [vmem:[%s2 + $0xb8] sm:$0xff]
        %v323 = vld [vmem:[%s2 + $0xc0] sm:$0xff]
        %v324 = vld [vmem:[%s2 + $0xc8] sm:$0xff]
        %v325 = vld [vmem:[%s2 + $0xd0] sm:$0xff]
        %v326 = vld [vmem:[%s2 + $0xd8] sm:$0xff]
        %v327 = vld [vmem:[%s2 + $0xe0] sm:$0xff]
        %v328 = vld [vmem:[%s2 + $0xe8] sm:$0xff]
        %v329 = vld [vmem:[%s2 + $0xf0] sm:$0xff]
        %v330 = vld [vmem:[%s2 + $0xf8] sm:$0xff]
        %v331 = vld [vmem:[%s2 + $0x100] sm:$0xff]
        %v332 = vld [vmem:[%s2 + $0x108] sm:$0xff]
        %v333 = vld [vmem:[%s2 + $0x110] sm:$0xff]
        %v334 = vld [vmem:[%s2 + $0x118] sm:$0xff]
        %v335 = vld [vmem:[%s2 + $0x120] sm:$0xff]
        %v336 = vld [vmem:[%s2 + $0x128] sm:$0xff]
        %v337 = vld [vmem:[%s2 + $0x130] sm:$0xff]
        %v338 = vld [vmem:[%s2 + $0x138] sm:$0xff]
        %v339 = vld [vmem:[%s2 + $0x140] sm:$0xff]
        %v340 = vld [vmem:[%s2 + $0x148] sm:$0xff]
        %v341 = vld [vmem:[%s2 + $0x150] sm:$0xff]
        %v342 = vld [vmem:[%s2 + $0x158] sm:$0xff]
        %v343 = vld [vmem:[%s2 + $0x160] sm:$0xff]
        %v344 = vld [vmem:[%s2 + $0x168] sm:$0xff]
        %v345 = vld [vmem:[%s2 + $0x170] sm:$0xff]
        %v346 = vld [vmem:[%s2 + $0x178] sm:$0xff]
        %v395 = vunpack.c.l.b16 %v299
        %v396 = vunpack.c.h.b16 %v299
        %v397 = vunpack.c.l.b16 %v300
        %v398 = vunpack.c.h.b16 %v300
        %v399 = vunpack.c.l.b16 %v301
        %v400 = vunpack.c.h.b16 %v301
        %v401 = vunpack.c.l.b16 %v302
        %v402 = vunpack.c.h.b16 %v302
        %v403 = vunpack.c.l.b16 %v303
        %v404 = vunpack.c.h.b16 %v303
        %v405 = vunpack.c.l.b16 %v304
        %v406 = vunpack.c.h.b16 %v304
        %v407 = vunpack.c.l.b16 %v305
        %v408 = vunpack.c.h.b16 %v305
        %v409 = vunpack.c.l.b16 %v306
        %v410 = vunpack.c.h.b16 %v306
        %v411 = vunpack.c.l.b16 %v307
        %v412 = vunpack.c.h.b16 %v307
        %v413 = vunpack.c.l.b16 %v308
        %v414 = vunpack.c.h.b16 %v308
        %v415 = vunpack.c.l.b16 %v309
        %v416 = vunpack.c.h.b16 %v309
        %v417 = vunpack.c.l.b16 %v310
        %v418 = vunpack.c.h.b16 %v310
        %v419 = vunpack.c.l.b16 %v311
        %v420 = vunpack.c.h.b16 %v311
        %v421 = vunpack.c.l.b16 %v312
        %v422 = vunpack.c.h.b16 %v312
        %v423 = vunpack.c.l.b16 %v313
        %v424 = vunpack.c.h.b16 %v313
        %v425 = vunpack.c.l.b16 %v314
        %v426 = vunpack.c.h.b16 %v314
        %v427 = vunpack.c.l.b16 %v315
        %v428 = vunpack.c.h.b16 %v315
        %v429 = vunpack.c.l.b16 %v316
        %v430 = vunpack.c.h.b16 %v316
        %v431 = vunpack.c.l.b16 %v317
        %v432 = vunpack.c.h.b16 %v317
        %v433 = vunpack.c.l.b16 %v318
        %v434 = vunpack.c.h.b16 %v318
        %v435 = vunpack.c.l.b16 %v319
        %v436 = vunpack.c.h.b16 %v319
        %v437 = vunpack.c.l.b16 %v320
        %v438 = vunpack.c.h.b16 %v320
        %v439 = vunpack.c.l.b16 %v321
        %v440 = vunpack.c.h.b16 %v321
        %v441 = vunpack.c.l.b16 %v322
        %v442 = vunpack.c.h.b16 %v322
        %v443 = vunpack.c.l.b16 %v323
        %v444 = vunpack.c.h.b16 %v323
        %v445 = vunpack.c.l.b16 %v324
        %v446 = vunpack.c.h.b16 %v324
        %v447 = vunpack.c.l.b16 %v325
        %v448 = vunpack.c.h.b16 %v325
        %v449 = vunpack.c.l.b16 %v326
        %v450 = vunpack.c.h.b16 %v326
        %v451 = vunpack.c.l.b16 %v327
        %v452 = vunpack.c.h.b16 %v327
        %v453 = vunpack.c.l.b16 %v328
        %v454 = vunpack.c.h.b16 %v328
        %v455 = vunpack.c.l.b16 %v329
        %v456 = vunpack.c.h.b16 %v329
        %v457 = vunpack.c.l.b16 %v330
        %v458 = vunpack.c.h.b16 %v330
        %v459 = vunpack.c.l.b16 %v331
        %v460 = vunpack.c.h.b16 %v331
        %v461 = vunpack.c.l.b16 %v332
        %v462 = vunpack.c.h.b16 %v332
        %v463 = vunpack.c.l.b16 %v333
        %v464 = vunpack.c.h.b16 %v333
        %v465 = vunpack.c.l.b16 %v334
        %v466 = vunpack.c.h.b16 %v334
        %v467 = vunpack.c.l.b16 %v335
        %v468 = vunpack.c.h.b16 %v335
        %v469 = vunpack.c.l.b16 %v336
        %v470 = vunpack.c.h.b16 %v336
        %v471 = vunpack.c.l.b16 %v337
        %v472 = vunpack.c.h.b16 %v337
        %v473 = vunpack.c.l.b16 %v338
        %v474 = vunpack.c.h.b16 %v338
        %v475 = vunpack.c.l.b16 %v339
        %v476 = vunpack.c.h.b16 %v339
        %v477 = vunpack.c.l.b16 %v340
        %v478 = vunpack.c.h.b16 %v340
        %v479 = vunpack.c.l.b16 %v341
        %v480 = vunpack.c.h.b16 %v341
        %v481 = vunpack.c.l.b16 %v342
        %v482 = vunpack.c.h.b16 %v342
        %v483 = vunpack.c.l.b16 %v343
        %v484 = vunpack.c.h.b16 %v343
        %v485 = vunpack.c.l.b16 %v344
        %v486 = vunpack.c.h.b16 %v344
        %v487 = vunpack.c.l.b16 %v345
        %v488 = vunpack.c.h.b16 %v345
        %v489 = vunpack.c.l.b16 %v346
        %v490 = vunpack.c.h.b16 %v346
        %v491 = vpack.c.b16 %v401, %v395
        %v492 = vpack.c.b16 %v402, %v396
        %v493 = vpack.c.b16 %v403, %v397
        %v494 = vpack.c.b16 %v404, %v398
        %v495 = vpack.c.b16 %v405, %v399
        %v496 = vpack.c.b16 %v406, %v400
        %v497 = vpack.c.b16 %v413, %v407
        %v498 = vpack.c.b16 %v414, %v408
        %v499 = vpack.c.b16 %v415, %v409
        %v500 = vpack.c.b16 %v416, %v410
        %v501 = vpack.c.b16 %v417, %v411
        %v502 = vpack.c.b16 %v418, %v412
        %v503 = vpack.c.b16 %v425, %v419
        %v504 = vpack.c.b16 %v426, %v420
        %v505 = vpack.c.b16 %v427, %v421
        %v506 = vpack.c.b16 %v428, %v422
        %v507 = vpack.c.b16 %v429, %v423
        %v508 = vpack.c.b16 %v430, %v424
        %v509 = vpack.c.b16 %v437, %v431
        %v510 = vpack.c.b16 %v438, %v432
        %v511 = vpack.c.b16 %v439, %v433
        %v512 = vpack.c.b16 %v440, %v434
        %v513 = vpack.c.b16 %v441, %v435
        %v514 = vpack.c.b16 %v442, %v436
        %v515 = vpack.c.b16 %v449, %v443
        %v516 = vpack.c.b16 %v450, %v444
        %v517 = vpack.c.b16 %v451, %v445
        %v518 = vpack.c.b16 %v452, %v446
        %v519 = vpack.c.b16 %v453, %v447
        %v520 = vpack.c.b16 %v454, %v448
        %v521 = vpack.c.b16 %v461, %v455
        %v522 = vpack.c.b16 %v462, %v456
        %v523 = vpack.c.b16 %v463, %v457
        %v524 = vpack.c.b16 %v464, %v458
        %v525 = vpack.c.b16 %v465, %v459
        %v526 = vpack.c.b16 %v466, %v460
        %v527 = vpack.c.b16 %v473, %v467
        %v528 = vpack.c.b16 %v474, %v468
        %v529 = vpack.c.b16 %v475, %v469
        %v530 = vpack.c.b16 %v476, %v470
        %v531 = vpack.c.b16 %v477, %v471
        %v532 = vpack.c.b16 %v478, %v472
        %v533 = vpack.c.b16 %v485, %v479
        %v534 = vpack.c.b16 %v486, %v480
        %v535 = vpack.c.b16 %v487, %v481
        %v536 = vpack.c.b16 %v488, %v482
        %v537 = vpack.c.b16 %v489, %v483
        %v538 = vpack.c.b16 %v490, %v484
        %587 = vmatprep.subr.bf16.mxu0 %v492
        %588 = vmatpush1.bf16.xpose.msra.mxu0 %v491
        %589 = vmatprep.subr.bf16.mxu0 %v498
        %590 = vmatpush1.bf16.xpose.msra.mxu0 %v497
        %591 = vmatprep.subr.bf16.mxu0 %v504
        %592 = vmatpush1.bf16.xpose.msra.mxu0 %v503
        %593 = vmatprep.subr.bf16.mxu0 %v510
        %594 = vmatpush1.bf16.xpose.msra.mxu0 %v509
        %595 = vmatprep.subr.bf16.mxu0 %v516
        %596 = vmatpush1.bf16.xpose.msra.mxu0 %v515
        %597 = vmatprep.subr.bf16.mxu0 %v522
        %598 = vmatpush1.bf16.xpose.msra.mxu0 %v521
        %599 = vmatprep.subr.bf16.mxu0 %v528
        %600 = vmatpush1.bf16.xpose.msra.mxu0 %v527
        %601 = vmatprep.subr.bf16.mxu0 %v534
        %602 = vmatpush1.bf16.xpose.msra.mxu0 %v533
        %603 = vmatprep.subr.bf16.mxu0 0
        %604 = vmatpush1.bf16.xpose.msra.mxu0 0
        %605 = vmatprep.subr.bf16.mxu0 0
        %606 = vmatpush1.bf16.xpose.msra.mxu0 0
        %607 = vmatprep.subr.bf16.mxu0 0
        %608 = vmatpush1.bf16.xpose.msra.mxu0 0
        %609 = vmatprep.subr.bf16.mxu0 0
        %610 = vmatpush1.bf16.xpose.msra.mxu0 0
        %611 = vmatprep.subr.bf16.mxu0 0
        %612 = vmatpush1.bf16.xpose.msra.mxu0 0
        %613 = vmatprep.subr.bf16.mxu0 0
        %614 = vmatpush1.bf16.xpose.msra.mxu0 0
        %615 = vmatprep.subr.bf16.mxu0 0
        %616 = vmatpush1.bf16.xpose.msra.mxu0 0
        %617 = vmatprep.subr.bf16.mxu0 0
        %618 = vmatpush1.bf16.xpose.msra.mxu0 0
        %619 = vmatprep.mubr.bf16.mxu0 %v288
        %620 = vmatmul.mubr.bf16.gmra.mrb[0].mxu0 %v287
        %v621 = vpop.f32.mrb[0].mxu0
        %v622 = vadd.f32 0.0, %v621
        %v623 = vpop.f32.mrb[0].mxu0
        %v624 = vpop.f32.mrb[0].mxu0
        %v625 = vadd.f32 0.0, %v624
        %v626 = vpop.f32.mrb[0].mxu0
        %627 = vmatprep.mubr.bf16.mxu0 %v294
        %628 = vmatmul.mubr.bf16.gmra.mrb[0].mxu0 %v293
        %v629 = vpop.f32.mrb[0].mxu0
        %v630 = vadd.f32 0.0, %v629
        %v631 = vpop.f32.mrb[0].mxu0
        %v632 = vpop.f32.mrb[0].mxu0
        %v633 = vadd.f32 0.0, %v632
        %v634 = vpop.f32.mrb[0].mxu0
        %635 = vdwg.mxu0
        %636 = vmatprep.subr.bf16.mxu0 %v494
        %637 = vmatpush1.bf16.xpose.msra.mxu0 %v493
        %638 = vmatprep.subr.bf16.mxu0 %v500
        %639 = vmatpush1.bf16.xpose.msra.mxu0 %v499
        %640 = vmatprep.subr.bf16.mxu0 %v506
        %641 = vmatpush1.bf16.xpose.msra.mxu0 %v505
        %642 = vmatprep.subr.bf16.mxu0 %v512
        %643 = vmatpush1.bf16.xpose.msra.mxu0 %v511
        %644 = vmatprep.subr.bf16.mxu0 %v518
        %645 = vmatpush1.bf16.xpose.msra.mxu0 %v517
        %646 = vmatprep.subr.bf16.mxu0 %v524
        %647 = vmatpush1.bf16.xpose.msra.mxu0 %v523
        %648 = vmatprep.subr.bf16.mxu0 %v530
        %649 = vmatpush1.bf16.xpose.msra.mxu0 %v529
        %650 = vmatprep.subr.bf16.mxu0 %v536
        %651 = vmatpush1.bf16.xpose.msra.mxu0 %v535
        %652 = vmatprep.subr.bf16.mxu0 0
        %653 = vmatpush1.bf16.xpose.msra.mxu0 0
        %654 = vmatprep.subr.bf16.mxu0 0
        %655 = vmatpush1.bf16.xpose.msra.mxu0 0
        %656 = vmatprep.subr.bf16.mxu0 0
        %657 = vmatpush1.bf16.xpose.msra.mxu0 0
        %658 = vmatprep.subr.bf16.mxu0 0
        %659 = vmatpush1.bf16.xpose.msra.mxu0 0
        %660 = vmatprep.subr.bf16.mxu0 0
        %661 = vmatpush1.bf16.xpose.msra.mxu0 0
        %662 = vmatprep.subr.bf16.mxu0 0
        %663 = vmatpush1.bf16.xpose.msra.mxu0 0
        %664 = vmatprep.subr.bf16.mxu0 0
        %665 = vmatpush1.bf16.xpose.msra.mxu0 0
        %666 = vmatprep.subr.bf16.mxu0 0
        %667 = vmatpush1.bf16.xpose.msra.mxu0 0
        %668 = vmatprep.mubr.bf16.mxu0 %v290
        %669 = vmatmul.mubr.bf16.gmra.mrb[0].mxu0 %v289
        %v670 = vpop.f32.mrb[0].mxu0
        %v671 = vadd.f32 %v622, %v670
        %v672 = vpop.f32.mrb[0].mxu0
        %v673 = vpop.f32.mrb[0].mxu0
        %v674 = vadd.f32 %v625, %v673
        %v675 = vpop.f32.mrb[0].mxu0
        %676 = vmatprep.mubr.bf16.mxu0 %v296
        %677 = vmatmul.mubr.bf16.gmra.mrb[0].mxu0 %v295
        %v678 = vpop.f32.mrb[0].mxu0
        %v679 = vadd.f32 %v630, %v678
        %v680 = vpop.f32.mrb[0].mxu0
        %v681 = vpop.f32.mrb[0].mxu0
        %v682 = vadd.f32 %v633, %v681
        %v683 = vpop.f32.mrb[0].mxu0
        %684 = vdwg.mxu0
        %685 = vmatprep.subr.bf16.mxu0 %v496
        %686 = vmatpush1.bf16.xpose.msra.mxu0 %v495
        %687 = vmatprep.subr.bf16.mxu0 %v502
        %688 = vmatpush1.bf16.xpose.msra.mxu0 %v501
        %689 = vmatprep.subr.bf16.mxu0 %v508
        %690 = vmatpush1.bf16.xpose.msra.mxu0 %v507
        %691 = vmatprep.subr.bf16.mxu0 %v514
        %692 = vmatpush1.bf16.xpose.msra.mxu0 %v513
        %693 = vmatprep.subr.bf16.mxu0 %v520
        %694 = vmatpush1.bf16.xpose.msra.mxu0 %v519
        %695 = vmatprep.subr.bf16.mxu0 %v526
        %696 = vmatpush1.bf16.xpose.msra.mxu0 %v525
        %697 = vmatprep.subr.bf16.mxu0 %v532
        %698 = vmatpush1.bf16.xpose.msra.mxu0 %v531
        %699 = vmatprep.subr.bf16.mxu0 %v538
        %700 = vmatpush1.bf16.xpose.msra.mxu0 %v537
        %701 = vmatprep.subr.bf16.mxu0 0
        %702 = vmatpush1.bf16.xpose.msra.mxu0 0
        %703 = vmatprep.subr.bf16.mxu0 0
        %704 = vmatpush1.bf16.xpose.msra.mxu0 0
        %705 = vmatprep.subr.bf16.mxu0 0
        %706 = vmatpush1.bf16.xpose.msra.mxu0 0
        %707 = vmatprep.subr.bf16.mxu0 0
        %708 = vmatpush1.bf16.xpose.msra.mxu0 0
        %709 = vmatprep.subr.bf16.mxu0 0
        %710 = vmatpush1.bf16.xpose.msra.mxu0 0
        %711 = vmatprep.subr.bf16.mxu0 0
        %712 = vmatpush1.bf16.xpose.msra.mxu0 0
        %713 = vmatprep.subr.bf16.mxu0 0
        %714 = vmatpush1.bf16.xpose.msra.mxu0 0
        %715 = vmatprep.subr.bf16.mxu0 0
        %716 = vmatpush1.bf16.xpose.msra.mxu0 0
        %717 = vmatprep.mubr.bf16.mxu0 %v292
        %718 = vmatmul.mubr.bf16.gmra.mrb[0].mxu0 %v291
        %v719 = vpop.f32.mrb[0].mxu0
        %v720 = vadd.f32 %v671, %v719
        %v721 = vpop.f32.mrb[0].mxu0
        %v722 = vpop.f32.mrb[0].mxu0
        %v723 = vadd.f32 %v674, %v722
        %v724 = vpop.f32.mrb[0].mxu0
        %725 = vmatprep.mubr.bf16.mxu0 %v298
        %726 = vmatmul.mubr.bf16.gmra.mrb[0].mxu0 %v297
        %v727 = vpop.f32.mrb[0].mxu0
        %v728 = vadd.f32 %v679, %v727
        %v729 = vpop.f32.mrb[0].mxu0
        %v730 = vpop.f32.mrb[0].mxu0
        %v731 = vadd.f32 %v682, %v730
        %v732 = vpop.f32.mrb[0].mxu0
        %733 = vdwg.mxu0
        %734 = vst [vmem:[%s167] sm:$0xff] %v720
        %735 = vst [vmem:[%s167 + $0x8] sm:$0xff] %v723
        %736 = vst [vmem:[%s167 + $0x10] sm:$0xff] %v728
        %737 = vst [vmem:[%s167 + $0x18] sm:$0xff] %v731
        %s738 = sand.u32 %s94, 1
        %s739 = scalar_lea.sflag [#allocation4], %s738
        %s740 = sand.u32 %s94, 1
        %s741 = smul.addr %s740, 32
        %s742 = scalar_lea.vmem [#allocation3], %s741
        // Predicated region
        $region33: #{vlm_head_forward.3} parent=31 // pred_check
          %p743 = pneg %p104
        $region34: #{vlm_head_forward.3} parent=31 // pred_check_branch
          %745 = sbr.rel (%p743) target = $region36
        $region35: #{vlm_head_forward.3} parent=31 // pred_region
          %s746 = smul.u32 4, %s18
          %s748 = ssub.s32 512, 512
          %749 = vsyncadd %s739, %s748
          %s750 = smul.addr %s746, 128
          %s751 = scalar_lea.hbm %s3, %s750
          %s752 = sshll.u32 %s742, 4
          %s753 = int_to_ptr.vmem [resolvable:$true] %s752
          %758 = dma.vmem_to_hbm [thread:$0]  %s753, 512, %s751, %s739, 128, 128, 8
        $region36: #{vlm_head_forward.3} parent=31 // pred_fallthru
          _
      $region32: #{vlm_head_forward.3} parent=5 // pred_fallthru
        _
      %p759 = scmp.le.s32.totalorder 2, %s13
      // Predicated region
      $region37: #{vlm_head_forward.3} parent=5 // pred_check
        %p760 = pneg %p759
      $region38: #{vlm_head_forward.3} parent=5 // pred_check_branch
        %762 = sbr.rel (%p760) target = $region40
      $region39: #{vlm_head_forward.3} parent=5 // pred_region
        %s763 = ssub.s32 %s13, 2
        // Predicated region
        $region41: #{vlm_head_forward.3} parent=39 // pred_check
          %p764 = pneg %p110
        $region42: #{vlm_head_forward.3} parent=39 // pred_check_branch
          %766 = sbr.rel (%p764) target = $region44
        $region43: #{vlm_head_forward.3} parent=39 // pred_region
          %s767 = sand.u32 %s95, 1
          %s768 = scalar_lea.sflag [#allocation4], %s767
          %s769 = sand.u32 %s95, 1
          %s770 = smul.addr %s769, 32
          %s771 = scalar_lea.vmem [#allocation3], %s770
          %772 = dma.done %s768, 512
        $region44: #{vlm_head_forward.3} parent=39 // pred_fallthru
          _
      $region40: #{vlm_head_forward.3} parent=5 // pred_fallthru
        _
    $region6: #{vlm_head_forward.3} parent=1 // loop_footer
      %s17 = sadd.s32 1, %s13
    $region7: #{vlm_head_forward.3} parent=1 // loop_footer_branch
      %12 = sbr.rel target = $region3
    $region8: #{vlm_head_forward.3} parent=1 // loop_exit
      _
    %773 = vsyncpa [#allocation4], 1
    %s774 = scalar_lea.sflag [#allocation4], 1
    %775 = vsyncpa %s774, 1

// kernel: vlm_head_forward.2
$region0: #{vlm_head_forward.2}
  #allocation0 [shape = 'u32[]', space=smem, size = 0x4, offset = 0x4, fixed_abs, tag = 'smem constant byte address 0x4 - core index']
  #allocation1 [shape = 'u32[144,128]{1,0:T(1,128)}', space=vmem, size = 0x12000, scoped, tag = 'internal scratch']
  %s0 = inlined_call_operand.hbm [shape: f32[128,512], index: 0, kind: input, shape index: {}]
  %s1 = inlined_call_operand.hbm [shape: f32[512,768], index: 1, kind: input, shape index: {}]
  %s2 = inlined_call_operand.vmem [shape: bf16[128,768], index: 2, kind: output, shape index: {}]
  %s3 = sld [smem:[#allocation0]]
  $region49: #{vlm_head_forward.2} parent=0
    _
  %s5 = ssub.s32 1, %s3
  %s6 = scalar_select 0, %s5, %s3
  $region1: #{vlm_head_forward.2} parent=0
    #allocation2 [shape = 'u8[131072]{0}', space=vmem, size = 0x20000, scoped, tag = 'input window, operand 0']
    #allocation3 [shape = 's32[2]{0}', space=sflag, size = 0x8, scoped, tag = 'scoped memory for vlm_head_forward.2']
    #allocation4 [shape = 'u8[1572864]{0}', space=vmem, size = 0x180000, scoped, tag = 'input window, operand 1, single buffered']
    #allocation5 [shape = 's32[1]{0}', space=sflag, size = 0x4, scoped, tag = 'scoped memory for vlm_head_forward.2']
    %7 = vsyncpa [#allocation3], 0
    %s8 = scalar_lea.sflag [#allocation3], 1
    %9 = vsyncpa %s8, 0
    %10 = vsyncpa [#allocation5], 0
    loop: start=0, step=1, limit=6
    $region2: #{vlm_head_forward.2} parent=1 // loop_pre_header
      _
    $region3: #{vlm_head_forward.2} parent=1 // loop_header
      %s12 = sphi 0, %s16
      %p13 = scmp.ge.s32.totalorder %s12, 6
      %s22 = sphi 0, %s24
      %s25 = sphi 0, %s22
      %s26 = sphi 0, %s25
      %s42 = sphi 0, %s26
      %s46 = sphi 0, %s46
      %s48 = sphi 0, %s46
      %s49 = sphi 0, %s48
      %s63 = sphi 0, %s49
      %s69 = sphi 0, %s71
      %s72 = sphi 0, %s69
      %s73 = sphi 0, %s72
      %s89 = sphi 0, %s73
    $region4: #{vlm_head_forward.2} parent=1 // loop_header_branch
      %15 = sbr.rel (%p13) target = $region8
    $region5: #{vlm_head_forward.2} parent=1 // loop_body
      %s17 = ssub.s32 %s12, 1
      %s18 = ssub.s32 %s12, 2
      %s19 = sadd.s32 %s12, 1
      %s20 = ssub.s32 %s12, %s19
      %p21 = scmp.eq.s32.totalorder %s20, 0
      %s23 = sadd.s32 %s22, 1
      %s24 = scalar_select %p21, %s22, %s23
      %p27 = pneg %p21
      %p28 = scmp.eq.s32.totalorder %s12, 3
      %p29 = por %p27, %p28
      %p30 = scmp.ne.s32.totalorder %s22, %s25
      %p31 = scmp.eq.s32.totalorder %s12, 0
      %p32 = por %p30, %p31
      %p33 = scmp.ne.s32.totalorder %s22, %s25
      %p34 = scmp.eq.s32.totalorder %s17, 3
      %p35 = por %p33, %p34
      %p36 = scmp.ne.s32.totalorder %s25, %s26
      %p37 = scmp.eq.s32.totalorder %s17, 0
      %p38 = por %p36, %p37
      %p39 = scmp.ne.s32.totalorder %s25, %s26
      %p40 = scmp.eq.s32.totalorder %s18, 3
      %p41 = por %p39, %p40
      %p43 = scmp.ne.s32.totalorder %s26, %s42
      %p44 = scmp.eq.s32.totalorder %s18, 0
      %p45 = por %p43, %p44
      %s47 = sadd.s32 %s46, 1
      %p50 = scmp.eq.s32.totalorder %s12, 3
      %p51 = scmp.ne.s32.totalorder %s46, %s48
      %p52 = scmp.eq.s32.totalorder %s12, 0
      %p53 = por %p51, %p52
      %p54 = scmp.ne.s32.totalorder %s46, %s48
      %p55 = scmp.eq.s32.totalorder %s17, 3
      %p56 = por %p54, %p55
      %p57 = scmp.ne.s32.totalorder %s48, %s49
      %p58 = scmp.eq.s32.totalorder %s17, 0
      %p59 = por %p57, %p58
      %p60 = scmp.ne.s32.totalorder %s48, %s49
      %p61 = scmp.eq.s32.totalorder %s18, 3
      %p62 = por %p60, %p61
      %p64 = scmp.ne.s32.totalorder %s49, %s63
      %p65 = scmp.eq.s32.totalorder %s18, 0
      %p66 = por %p64, %p65
      %s67 = ssub.s32 %s12, %s19
      %p68 = scmp.eq.s32.totalorder %s67, 0
      %s70 = sadd.s32 %s69, 1
      %s71 = scalar_select %p68, %s69, %s70
      %p74 = pneg %p68
      %p75 = scmp.eq.s32.totalorder %s12, 3
      %p76 = por %p74, %p75
      %p77 = scmp.ne.s32.totalorder %s69, %s72
      %p78 = scmp.eq.s32.totalorder %s12, 0
      %p79 = por %p77, %p78
      %p80 = scmp.ne.s32.totalorder %s69, %s72
      %p81 = scmp.eq.s32.totalorder %s17, 3
      %p82 = por %p80, %p81
      %p83 = scmp.ne.s32.totalorder %s72, %s73
      %p84 = scmp.eq.s32.totalorder %s17, 0
      %p85 = por %p83, %p84
      %p86 = scmp.ne.s32.totalorder %s72, %s73
      %p87 = scmp.eq.s32.totalorder %s18, 3
      %p88 = por %p86, %p87
      %p90 = scmp.ne.s32.totalorder %s73, %s89
      %p91 = scmp.eq.s32.totalorder %s18, 0
      %p92 = por %p90, %p91
      %p93 = scmp.le.s32.totalorder 1, %s12
      %p94 = scmp.lt.s32.totalorder %s12, 5
      %p95 = pnand %p93, %p94
      %p96 = pneg %p95
      // Predicated region
      $region9: #{vlm_head_forward.2} parent=5 // pred_check
        _
      $region10: #{vlm_head_forward.2} parent=5 // pred_check_branch
        %98 = sbr.rel (%p95) target = $region12
      $region11: #{vlm_head_forward.2} parent=5 // pred_region
        %s99 = ssub.s32 %s12, 1
        // Predicated region
        $region13: #{vlm_head_forward.2} parent=11 // pred_check
          %p100 = pneg %p59
        $region14: #{vlm_head_forward.2} parent=11 // pred_check_branch
          %102 = sbr.rel (%p100) target = $region16
        $region15: #{vlm_head_forward.2} parent=11 // pred_region
          %s104 = ssub.s32 49152, 49152
          %105 = vsyncadd [#allocation5], %s104
          %s106 = sshll.u32 [#allocation4], 4
          %s107 = int_to_ptr.vmem [resolvable:$true] %s106
          %112 = dma.hbm_to_vmem [thread:$0]  %s1, 49152, %s107, [#allocation5], 768, 768, 48
        $region16: #{vlm_head_forward.2} parent=11 // pred_fallthru
          _
      $region12: #{vlm_head_forward.2} parent=5 // pred_fallthru
        _
      %p113 = scmp.lt.s32.totalorder %s12, 4
      // Predicated region
      $region17: #{vlm_head_forward.2} parent=5 // pred_check
        %p114 = pneg %p113
      $region18: #{vlm_head_forward.2} parent=5 // pred_check_branch
        %116 = sbr.rel (%p114) target = $region20
      $region19: #{vlm_head_forward.2} parent=5 // pred_region
        // Predicated region
        $region21: #{vlm_head_forward.2} parent=19 // pred_check
          %p117 = pneg %p32
        $region22: #{vlm_head_forward.2} parent=19 // pred_check_branch
          %119 = sbr.rel (%p117) target = $region24
        $region23: #{vlm_head_forward.2} parent=19 // pred_region
          %s120 = sand.u32 %s22, 1
          %s121 = scalar_lea.sflag [#allocation3], %s120
          %s122 = sand.u32 %s22, 1
          %s123 = smul.addr %s122, 128
          %s124 = scalar_lea.vmem [#allocation2], %s123
          %s125 = smul.u32 4, %s12
          %s127 = ssub.s32 2048, 2048
          %128 = vsyncadd %s121, %s127
          %s129 = smul.addr %s125, 4
          %s130 = smul.addr %s129, 128
          %s131 = scalar_lea.hbm %s0, %s130
          %s132 = sshll.u32 %s124, 4
          %s133 = int_to_ptr.vmem [resolvable:$true] %s132
          %138 = dma.hbm_to_vmem [thread:$0]  %s131, 2048, %s133, %s121, 512, 512, 32
        $region24: #{vlm_head_forward.2} parent=19 // pred_fallthru
          _
      $region20: #{vlm_head_forward.2} parent=5 // pred_fallthru
        _
      %p139 = scmp.le.s32.totalorder 1, %s12
      %p140 = scmp.lt.s32.totalorder %s12, 5
      %p141 = pnand %p139, %p140
      %p142 = pneg %p141
      // Predicated region
      $region25: #{vlm_head_forward.2} parent=5 // pred_check
        _
      $region26: #{vlm_head_forward.2} parent=5 // pred_check_branch
        %144 = sbr.rel (%p141) target = $region28
      $region27: #{vlm_head_forward.2} parent=5 // pred_region
        %s145 = ssub.s32 %s12, 1
        %s146 = sand.u32 %s25, 1
        %s147 = scalar_lea.sflag [#allocation3], %s146
        %s148 = sand.u32 %s25, 1
        %s149 = smul.addr %s148, 128
        %s150 = scalar_lea.vmem [#allocation2], %s149
        // Predicated region
        $region29: #{vlm_head_forward.2} parent=27 // pred_check
          %p151 = pneg %p38
        $region30: #{vlm_head_forward.2} parent=27 // pred_check_branch
          %153 = sbr.rel (%p151) target = $region32
        $region31: #{vlm_head_forward.2} parent=27 // pred_region
          %154 = dma.done %s147, 2048
        $region32: #{vlm_head_forward.2} parent=27 // pred_fallthru
          _
        // Predicated region
        $region33: #{vlm_head_forward.2} parent=27 // pred_check
          %p155 = pneg %p59
        $region34: #{vlm_head_forward.2} parent=27 // pred_check_branch
          %157 = sbr.rel (%p155) target = $region36
        $region35: #{vlm_head_forward.2} parent=27 // pred_region
          %158 = dma.done [#allocation5], 49152
        $region36: #{vlm_head_forward.2} parent=27 // pred_fallthru
          _
        %s159 = sand.u32 %s25, 1
        %s160 = scalar_lea.sflag [#allocation3], %s159
        %s161 = sand.u32 %s25, 1
        %s162 = smul.addr %s161, 128
        %s163 = scalar_lea.vmem [#allocation2], %s162
        %p164 = pneg %p38
        %p165 = pneg %p35
        %p166 = pneg %p59
        %p167 = pneg %p56
        %p168 = pneg %p85
        %p169 = pneg %p82
        %s170 = smul.u32 4, %s17
        %p171 = scmp.lt.s32.totalorder %s170, 15
        %s172 = scalar_select %p171, %s170, 15
        %s173 = smul.addr %s172, 6
        %s174 = smul.addr %s173, 4
        %s175 = scalar_lea.vmem %s2, %s174
        %s176 = smul.u32 4, %s17
        %s177 = smul.u32 4, %s17
        %p178 = scmp.lt.s32.totalorder %s177, 15
        %s179 = scalar_select %p178, %s177, 15
        %s180 = smul.addr %s179, 6
        %s181 = smul.addr %s180, 4
        %s182 = scalar_lea.vmem %s2, %s181
        %s183 = smul.u32 4, %s17
        %v184 = vld [vmem:[%s150] sm:$0xff]
        %v185 = vld [vmem:[%s150 + $0x8] sm:$0xff]
        %v186 = vld [vmem:[%s150 + $0x10] sm:$0xff]
        %v187 = vld [vmem:[%s150 + $0x18] sm:$0xff]
        %v188 = vld [vmem:[%s150 + $0x20] sm:$0xff]
        %v189 = vld [vmem:[%s150 + $0x28] sm:$0xff]
        %v190 = vld [vmem:[%s150 + $0x30] sm:$0xff]
        %v191 = vld [vmem:[%s150 + $0x38] sm:$0xff]
        %v192 = vld [vmem:[%s150 + $0x40] sm:$0xff]
        %v193 = vld [vmem:[%s150 + $0x48] sm:$0xff]
        %v194 = vld [vmem:[%s150 + $0x50] sm:$0xff]
        %v195 = vld [vmem:[%s150 + $0x58] sm:$0xff]
        %v196 = vld [vmem:[%s150 + $0x60] sm:$0xff]
        %v197 = vld [vmem:[%s150 + $0x68] sm:$0xff]
        %v198 = vld [vmem:[%s150 + $0x70] sm:$0xff]
        %v199 = vld [vmem:[%s150 + $0x78] sm:$0xff]
        %v200 = vpack.c.bf16 %v188, %v184
        %v201 = vpack.c.bf16 %v189, %v185
        %v202 = vpack.c.bf16 %v190, %v186
        %v203 = vpack.c.bf16 %v191, %v187
        %v204 = vpack.c.bf16 %v196, %v192
        %v205 = vpack.c.bf16 %v197, %v193
        %v206 = vpack.c.bf16 %v198, %v194
        %v207 = vpack.c.bf16 %v199, %v195
        %v208 = vld [vmem:[#allocation4] sm:$0xff]
        %v209 = vld [vmem:[#allocation4 + $0x8] sm:$0xff]
        %v210 = vld [vmem:[#allocation4 + $0x10] sm:$0xff]
        %v211 = vld [vmem:[#allocation4 + $0x18] sm:$0xff]
        %v212 = vld [vmem:[#allocation4 + $0x20] sm:$0xff]
        %v213 = vld [vmem:[#allocation4 + $0x28] sm:$0xff]
        %v214 = vld [vmem:[#allocation4 + $0x30] sm:$0xff]
        %v215 = vld [vmem:[#allocation4 + $0x38] sm:$0xff]
        %v216 = vld [vmem:[#allocation4 + $0x40] sm:$0xff]
        %v217 = vld [vmem:[#allocation4 + $0x48] sm:$0xff]
        %v218 = vld [vmem:[#allocation4 + $0x50] sm:$0xff]
        %v219 = vld [vmem:[#allocation4 + $0x58] sm:$0xff]
        %v220 = vld [vmem:[#allocation4 + $0x60] sm:$0xff]
        %v221 = vld [vmem:[#allocation4 + $0x68] sm:$0xff]
        %v222 = vld [vmem:[#allocation4 + $0x70] sm:$0xff]
        %v223 = vld [vmem:[#allocation4 + $0x78] sm:$0xff]
        %v224 = vld [vmem:[#allocation4 + $0x80] sm:$0xff]
        %v225 = vld [vmem:[#allocation4 + $0x88] sm:$0xff]
        %v226 = vld [vmem:[#allocation4 + $0x90] sm:$0xff]
        %v227 = vld [vmem:[#allocation4 + $0x98] sm:$0xff]
        %v228 = vld [vmem:[#allocation4 + $0xa0] sm:$0xff]
        %v229 = vld [vmem:[#allocation4 + $0xa8] sm:$0xff]
        %v230 = vld [vmem:[#allocation4 + $0xb0] sm:$0xff]
        %v231 = vld [vmem:[#allocation4 + $0xb8] sm:$0xff]
        %v232 = vld [vmem:[#allocation4 + $0xc0] sm:$0xff]
        %v233 = vld [vmem:[#allocation4 + $0xc8] sm:$0xff]
        %v234 = vld [vmem:[#allocation4 + $0xd0] sm:$0xff]
        %v235 = vld [vmem:[#allocation4 + $0xd8] sm:$0xff]
        %v236 = vld [vmem:[#allocation4 + $0xe0] sm:$0xff]
        %v237 = vld [vmem:[#allocation4 + $0xe8] sm:$0xff]
        %v238 = vld [vmem:[#allocation4 + $0xf0] sm:$0xff]
        %v239 = vld [vmem:[#allocation4 + $0xf8] sm:$0xff]
        %v240 = vld [vmem:[#allocation4 + $0x100] sm:$0xff]
        %v241 = vld [vmem:[#allocation4 + $0x108] sm:$0xff]
        %v242 = vld [vmem:[#allocation4 + $0x110] sm:$0xff]
        %v243 = vld [vmem:[#allocation4 + $0x118] sm:$0xff]
        %v244 = vld [vmem:[#allocation4 + $0x120] sm:$0xff]
        %v245 = vld [vmem:[#allocation4 + $0x128] sm:$0xff]
        %v246 = vld [vmem:[#allocation4 + $0x130] sm:$0xff]
        %v247 = vld [vmem:[#allocation4 + $0x138] sm:$0xff]
        %v248 = vld [vmem:[#allocation4 + $0x140] sm:$0xff]
        %v249 = vld [vmem:[#allocation4 + $0x148] sm:$0xff]
        %v250 = vld [vmem:[#allocation4 + $0x150] sm:$0xff]
        %v251 = vld [vmem:[#allocation4 + $0x158] sm:$0xff]
        %v252 = vld [vmem:[#allocation4 + $0x160] sm:$0xff]
        %v253 = vld [vmem:[#allocation4 + $0x168] sm:$0xff]
        %v254 = vld [vmem:[#allocation4 + $0x170] sm:$0xff]
        %v255 = vld [vmem:[#allocation4 + $0x178] sm:$0xff]
        %v256 = vld [vmem:[#allocation4 + $0x180] sm:$0xff]
        %v257 = vld [vmem:[#allocation4 + $0x188] sm:$0xff]
        %v258 = vld [vmem:[#allocation4 + $0x190] sm:$0xff]
        %v259 = vld [vmem:[#allocation4 + $0x198] sm:$0xff]
        %v260 = vld [vmem:[#allocation4 + $0x1a0] sm:$0xff]
        %v261 = vld [vmem:[#allocation4 + $0x1a8] sm:$0xff]
        %v262 = vld [vmem:[#allocation4 + $0x1b0] sm:$0xff]
        %v263 = vld [vmem:[#allocation4 + $0x1b8] sm:$0xff]
        %v264 = vld [vmem:[#allocation4 + $0x1c0] sm:$0xff]
        %v265 = vld [vmem:[#allocation4 + $0x1c8] sm:$0xff]
        %v266 = vld [vmem:[#allocation4 + $0x1d0] sm:$0xff]
        %v267 = vld [vmem:[#allocation4 + $0x1d8] sm:$0xff]
        %v268 = vld [vmem:[#allocation4 + $0x1e0] sm:$0xff]
        %v269 = vld [vmem:[#allocation4 + $0x1e8] sm:$0xff]
        %v270 = vld [vmem:[#allocation4 + $0x1f0] sm:$0xff]
        %v271 = vld [vmem:[#allocation4 + $0x1f8] sm:$0xff]
        %v272 = vld [vmem:[#allocation4 + $0x200] sm:$0xff]
        %v273 = vld [vmem:[#allocation4 + $0x208] sm:$0xff]
        %v274 = vld [vmem:[#allocation4 + $0x210] sm:$0xff]
        %v275 = vld [vmem:[#allocation4 + $0x218] sm:$0xff]
        %v276 = vld [vmem:[#allocation4 + $0x220] sm:$0xff]
        %v277 = vld [vmem:[#allocation4 + $0x228] sm:$0xff]
        %v278 = vld [vmem:[#allocation4 + $0x230] sm:$0xff]
        %v279 = vld [vmem:[#allocation4 + $0x238] sm:$0xff]
        %v280 = vld [vmem:[#allocation4 + $0x240] sm:$0xff]
        %v281 = vld [vmem:[#allocation4 + $0x248] sm:$0xff]
        %v282 = vld [vmem:[#allocation4 + $0x250] sm:$0xff]
        %v283 = vld [vmem:[#allocation4 + $0x258] sm:$0xff]
        %v284 = vld [vmem:[#allocation4 + $0x260] sm:$0xff]
        %v285 = vld [vmem:[#allocation4 + $0x268] sm:$0xff]
        %v286 = vld [vmem:[#allocation4 + $0x270] sm:$0xff]
        %v287 = vld [vmem:[#allocation4 + $0x278] sm:$0xff]
        %v288 = vld [vmem:[#allocation4 + $0x280] sm:$0xff]
        %v289 = vld [vmem:[#allocation4 + $0x288] sm:$0xff]
        %v290 = vld [vmem:[#allocation4 + $0x290] sm:$0xff]
        %v291 = vld [vmem:[#allocation4 + $0x298] sm:$0xff]
        %v292 = vld [vmem:[#allocation4 + $0x2a0] sm:$0xff]
        %v293 = vld [vmem:[#allocation4 + $0x2a8] sm:$0xff]
        %v294 = vld [vmem:[#allocation4 + $0x2b0] sm:$0xff]
        %v295 = vld [vmem:[#allocation4 + $0x2b8] sm:$0xff]
        %v296 = vld [vmem:[#allocation4 + $0x2c0] sm:$0xff]
        %v297 = vld [vmem:[#allocation4 + $0x2c8] sm:$0xff]
        %v298 = vld [vmem:[#allocation4 + $0x2d0] sm:$0xff]
        %v299 = vld [vmem:[#allocation4 + $0x2d8] sm:$0xff]
        %v300 = vld [vmem:[#allocation4 + $0x2e0] sm:$0xff]
        %v301 = vld [vmem:[#allocation4 + $0x2e8] sm:$0xff]
        %v302 = vld [vmem:[#allocation4 + $0x2f0] sm:$0xff]
        %v303 = vld [vmem:[#allocation4 + $0x2f8] sm:$0xff]
        %v304 = vld [vmem:[#allocation4 + $0x300] sm:$0xff]
        %v305 = vld [vmem:[#allocation4 + $0x308] sm:$0xff]
        %v306 = vld [vmem:[#allocation4 + $0x310] sm:$0xff]
        %v307 = vld [vmem:[#allocation4 + $0x318] sm:$0xff]
        %v308 = vld [vmem:[#allocation4 + $0x320] sm:$0xff]
        %v309 = vld [vmem:[#allocation4 + $0x328] sm:$0xff]
        %v310 = vld [vmem:[#allocation4 + $0x330] sm:$0xff]
        %v311 = vld [vmem:[#allocation4 + $0x338] sm:$0xff]
        %v312 = vld [vmem:[#allocation4 + $0x340] sm:$0xff]
        %v313 = vld [vmem:[#allocation4 + $0x348] sm:$0xff]
        %v314 = vld [vmem:[#allocation4 + $0x350] sm:$0xff]
        %v315 = vld [vmem:[#allocation4 + $0x358] sm:$0xff]
        %v316 = vld [vmem:[#allocation4 + $0x360] sm:$0xff]
        %v317 = vld [vmem:[#allocation4 + $0x368] sm:$0xff]
        %v318 = vld [vmem:[#allocation4 + $0x370] sm:$0xff]
        %v319 = vld [vmem:[#allocation4 + $0x378] sm:$0xff]
        %v320 = vld [vmem:[#allocation4 + $0x380] sm:$0xff]
        %v321 = vld [vmem:[#allocation4 + $0x388] sm:$0xff]
        %v322 = vld [vmem:[#allocation4 + $0x390] sm:$0xff]
        %v323 = vld [vmem:[#allocation4 + $0x398] sm:$0xff]
        %v324 = vld [vmem:[#allocation4 + $0x3a0] sm:$0xff]
        %v325 = vld [vmem:[#allocation4 + $0x3a8] sm:$0xff]
        %v326 = vld [vmem:[#allocation4 + $0x3b0] sm:$0xff]
        %v327 = vld [vmem:[#allocation4 + $0x3b8] sm:$0xff]
        %v328 = vld [vmem:[#allocation4 + $0x3c0] sm:$0xff]
        %v329 = vld [vmem:[#allocation4 + $0x3c8] sm:$0xff]
        %v330 = vld [vmem:[#allocation4 + $0x3d0] sm:$0xff]
        %v331 = vld [vmem:[#allocation4 + $0x3d8] sm:$0xff]
        %v332 = vld [vmem:[#allocation4 + $0x3e0] sm:$0xff]
        %v333 = vld [vmem:[#allocation4 + $0x3e8] sm:$0xff]
        %v334 = vld [vmem:[#allocation4 + $0x3f0] sm:$0xff]
        %v335 = vld [vmem:[#allocation4 + $0x3f8] sm:$0xff]
        %v336 = vld [vmem:[#allocation4 + $0x400] sm:$0xff]
        %v337 = vld [vmem:[#allocation4 + $0x408] sm:$0xff]
        %v338 = vld [vmem:[#allocation4 + $0x410] sm:$0xff]
        %v339 = vld [vmem:[#allocation4 + $0x418] sm:$0xff]
        %v340 = vld [vmem:[#allocation4 + $0x420] sm:$0xff]
        %v341 = vld [vmem:[#allocation4 + $0x428] sm:$0xff]
        %v342 = vld [vmem:[#allocation4 + $0x430] sm:$0xff]
        %v343 = vld [vmem:[#allocation4 + $0x438] sm:$0xff]
        %v344 = vld [vmem:[#allocation4 + $0x440] sm:$0xff]
        %v345 = vld [vmem:[#allocation4 + $0x448] sm:$0xff]
        %v346 = vld [vmem:[#allocation4 + $0x450] sm:$0xff]
        %v347 = vld [vmem:[#allocation4 + $0x458] sm:$0xff]
        %v348 = vld [vmem:[#allocation4 + $0x460] sm:$0xff]
        %v349 = vld [vmem:[#allocation4 + $0x468] sm:$0xff]
        %v350 = vld [vmem:[#allocation4 + $0x470] sm:$0xff]
        %v351 = vld [vmem:[#allocation4 + $0x478] sm:$0xff]
        %v352 = vld [vmem:[#allocation4 + $0x480] sm:$0xff]
        %v353 = vld [vmem:[#allocation4 + $0x488] sm:$0xff]
        %v354 = vld [vmem:[#allocation4 + $0x490] sm:$0xff]
        %v355 = vld [vmem:[#allocation4 + $0x498] sm:$0xff]
        %v356 = vld [vmem:[#allocation4 + $0x4a0] sm:$0xff]
        %v357 = vld [vmem:[#allocation4 + $0x4a8] sm:$0xff]
        %v358 = vld [vmem:[#allocation4 + $0x4b0] sm:$0xff]
        %v359 = vld [vmem:[#allocation4 + $0x4b8] sm:$0xff]
        %v360 = vld [vmem:[#allocation4 + $0x4c0] sm:$0xff]
        %v361 = vld [vmem:[#allocation4 + $0x4c8] sm:$0xff]
        %v362 = vld [vmem:[#allocation4 + $0x4d0] sm:$0xff]
        %v363 = vld [vmem:[#allocation4 + $0x4d8] sm:$0xff]
        %v364 = vld [vmem:[#allocation4 + $0x4e0] sm:$0xff]
        %v365 = vld [vmem:[#allocation4 + $0x4e8] sm:$0xff]
        %v366 = vld [vmem:[#allocation4 + $0x4f0] sm:$0xff]
        %v367 = vld [vmem:[#allocation4 + $0x4f8] sm:$0xff]
        %v368 = vld [vmem:[#allocation4 + $0x500] sm:$0xff]
        %v369 = vld [vmem:[#allocation4 + $0x508] sm:$0xff]
        %v370 = vld [vmem:[#allocation4 + $0x510] sm:$0xff]
        %v371 = vld [vmem:[#allocation4 + $0x518] sm:$0xff]
        %v372 = vld [vmem:[#allocation4 + $0x520] sm:$0xff]
        %v373 = vld [vmem:[#allocation4 + $0x528] sm:$0xff]
        %v374 = vld [vmem:[#allocation4 + $0x530] sm:$0xff]
        %v375 = vld [vmem:[#allocation4 + $0x538] sm:$0xff]
        %v376 = vld [vmem:[#allocation4 + $0x540] sm:$0xff]
        %v377 = vld [vmem:[#allocation4 + $0x548] sm:$0xff]
        %v378 = vld [vmem:[#allocation4 + $0x550] sm:$0xff]
        %v379 = vld [vmem:[#allocation4 + $0x558] sm:$0xff]
        %v380 = vld [vmem:[#allocation4 + $0x560] sm:$0xff]
        %v381 = vld [vmem:[#allocation4 + $0x568] sm:$0xff]
        %v382 = vld [vmem:[#allocation4 + $0x570] sm:$0xff]
        %v383 = vld [vmem:[#allocation4 + $0x578] sm:$0xff]
        %v384 = vld [vmem:[#allocation4 + $0x580] sm:$0xff]
        %v385 = vld [vmem:[#allocation4 + $0x588] sm:$0xff]
        %v386 = vld [vmem:[#allocation4 + $0x590] sm:$0xff]
        %v387 = vld [vmem:[#allocation4 + $0x598] sm:$0xff]
        %v388 = vld [vmem:[#allocation4 + $0x5a0] sm:$0xff]
        %v389 = vld [vmem:[#allocation4 + $0x5a8] sm:$0xff]
        %v390 = vld [vmem:[#allocation4 + $0x5b0] sm:$0xff]
        %v391 = vld [vmem:[#allocation4 + $0x5b8] sm:$0xff]
        %v392 = vld [vmem:[#allocation4 + $0x5c0] sm:$0xff]
        %v393 = vld [vmem:[#allocation4 + $0x5c8] sm:$0xff]
        %v394 = vld [vmem:[#allocation4 + $0x5d0] sm:$0xff]
        %v395 = vld [vmem:[#allocation4 + $0x5d8] sm:$0xff]
        %v396 = vld [vmem:[#allocation4 + $0x5e0] sm:$0xff]
        %v397 = vld [vmem:[#allocation4 + $0x5e8] sm:$0xff]
        %v398 = vld [vmem:[#allocation4 + $0x5f0] sm:$0xff]
        %v399 = vld [vmem:[#allocation4 + $0x5f8] sm:$0xff]
        %v400 = vld [vmem:[#allocation4 + $0x600] sm:$0xff]
        %v401 = vld [vmem:[#allocation4 + $0x608] sm:$0xff]
        %v402 = vld [vmem:[#allocation4 + $0x610] sm:$0xff]
        %v403 = vld [vmem:[#allocation4 + $0x618] sm:$0xff]
        %v404 = vld [vmem:[#allocation4 + $0x620] sm:$0xff]
        %v405 = vld [vmem:[#allocation4 + $0x628] sm:$0xff]
        %v406 = vld [vmem:[#allocation4 + $0x630] sm:$0xff]
        %v407 = vld [vmem:[#allocation4 + $0x638] sm:$0xff]
        %v408 = vld [vmem:[#allocation4 + $0x640] sm:$0xff]
        %v409 = vld [vmem:[#allocation4 + $0x648] sm:$0xff]
        %v410 = vld [vmem:[#allocation4 + $0x650] sm:$0xff]
        %v411 = vld [vmem:[#allocation4 + $0x658] sm:$0xff]
        %v412 = vld [vmem:[#allocation4 + $0x660] sm:$0xff]
        %v413 = vld [vmem:[#allocation4 + $0x668] sm:$0xff]
        %v414 = vld [vmem:[#allocation4 + $0x670] sm:$0xff]
        %v415 = vld [vmem:[#allocation4 + $0x678] sm:$0xff]
        %v416 = vld [vmem:[#allocation4 + $0x680] sm:$0xff]
        %v417 = vld [vmem:[#allocation4 + $0x688] sm:$0xff]
        %v418 = vld [vmem:[#allocation4 + $0x690] sm:$0xff]
        %v419 = vld [vmem:[#allocation4 + $0x698] sm:$0xff]
        %v420 = vld [vmem:[#allocation4 + $0x6a0] sm:$0xff]
        %v421 = vld [vmem:[#allocation4 + $0x6a8] sm:$0xff]
        %v422 = vld [vmem:[#allocation4 + $0x6b0] sm:$0xff]
        %v423 = vld [vmem:[#allocation4 + $0x6b8] sm:$0xff]
        %v424 = vld [vmem:[#allocation4 + $0x6c0] sm:$0xff]
        %v425 = vld [vmem:[#allocation4 + $0x6c8] sm:$0xff]
        %v426 = vld [vmem:[#allocation4 + $0x6d0] sm:$0xff]
        %v427 = vld [vmem:[#allocation4 + $0x6d8] sm:$0xff]
        %v428 = vld [vmem:[#allocation4 + $0x6e0] sm:$0xff]
        %v429 = vld [vmem:[#allocation4 + $0x6e8] sm:$0xff]
        %v430 = vld [vmem:[#allocation4 + $0x6f0] sm:$0xff]
        %v431 = vld [vmem:[#allocation4 + $0x6f8] sm:$0xff]
        %v432 = vld [vmem:[#allocation4 + $0x700] sm:$0xff]
        %v433 = vld [vmem:[#allocation4 + $0x708] sm:$0xff]
        %v434 = vld [vmem:[#allocation4 + $0x710] sm:$0xff]
        %v435 = vld [vmem:[#allocation4 + $0x718] sm:$0xff]
        %v436 = vld [vmem:[#allocation4 + $0x720] sm:$0xff]
        %v437 = vld [vmem:[#allocation4 + $0x728] sm:$0xff]
        %v438 = vld [vmem:[#allocation4 + $0x730] sm:$0xff]
        %v439 = vld [vmem:[#allocation4 + $0x738] sm:$0xff]
        %v440 = vld [vmem:[#allocation4 + $0x740] sm:$0xff]
        %v441 = vld [vmem:[#allocation4 + $0x748] sm:$0xff]
        %v442 = vld [vmem:[#allocation4 + $0x750] sm:$0xff]
        %v443 = vld [vmem:[#allocation4 + $0x758] sm:$0xff]
        %v444 = vld [vmem:[#allocation4 + $0x760] sm:$0xff]
        %v445 = vld [vmem:[#allocation4 + $0x768] sm:$0xff]
        %v446 = vld [vmem:[#allocation4 + $0x770] sm:$0xff]
        %v447 = vld [vmem:[#allocation4 + $0x778] sm:$0xff]
        %v448 = vld [vmem:[#allocation4 + $0x780] sm:$0xff]
        %v449 = vld [vmem:[#allocation4 + $0x788] sm:$0xff]
        %v450 = vld [vmem:[#allocation4 + $0x790] sm:$0xff]
        %v451 = vld [vmem:[#allocation4 + $0x798] sm:$0xff]
        %v452 = vld [vmem:[#allocation4 + $0x7a0] sm:$0xff]
        %v453 = vld [vmem:[#allocation4 + $0x7a8] sm:$0xff]
        %v454 = vld [vmem:[#allocation4 + $0x7b0] sm:$0xff]
        %v455 = vld [vmem:[#allocation4 + $0x7b8] sm:$0xff]
        %v456 = vld [vmem:[#allocation4 + $0x7c0] sm:$0xff]
        %v457 = vld [vmem:[#allocation4 + $0x7c8] sm:$0xff]
        %v458 = vld [vmem:[#allocation4 + $0x7d0] sm:$0xff]
        %v459 = vld [vmem:[#allocation4 + $0x7d8] sm:$0xff]
        %v460 = vld [vmem:[#allocation4 + $0x7e0] sm:$0xff]
        %v461 = vld [vmem:[#allocation4 + $0x7e8] sm:$0xff]
        %v462 = vld [vmem:[#allocation4 + $0x7f0] sm:$0xff]
        %v463 = vld [vmem:[#allocation4 + $0x7f8] sm:$0xff]
        %v464 = vld [vmem:[#allocation4 + $0x800] sm:$0xff]
        %v465 = vld [vmem:[#allocation4 + $0x808] sm:$0xff]
        %v466 = vld [vmem:[#allocation4 + $0x810] sm:$0xff]
        %v467 = vld [vmem:[#allocation4 + $0x818] sm:$0xff]
        %v468 = vld [vmem:[#allocation4 + $0x820] sm:$0xff]
        %v469 = vld [vmem:[#allocation4 + $0x828] sm:$0xff]
        %v470 = vld [vmem:[#allocation4 + $0x830] sm:$0xff]
        %v471 = vld [vmem:[#allocation4 + $0x838] sm:$0xff]
        %v472 = vld [vmem:[#allocation4 + $0x840] sm:$0xff]
        %v473 = vld [vmem:[#allocation4 + $0x848] sm:$0xff]
        %v474 = vld [vmem:[#allocation4 + $0x850] sm:$0xff]
        %v475 = vld [vmem:[#allocation4 + $0x858] sm:$0xff]
        %v476 = vld [vmem:[#allocation4 + $0x860] sm:$0xff]
        %v477 = vld [vmem:[#allocation4 + $0x868] sm:$0xff]
        %v478 = vld [vmem:[#allocation4 + $0x870] sm:$0xff]
        %v479 = vld [vmem:[#allocation4 + $0x878] sm:$0xff]
        %v480 = vld [vmem:[#allocation4 + $0x880] sm:$0xff]
        %v481 = vld [vmem:[#allocation4 + $0x888] sm:$0xff]
        %v482 = vld [vmem:[#allocation4 + $0x890] sm:$0xff]
        %v483 = vld [vmem:[#allocation4 + $0x898] sm:$0xff]
        %v484 = vld [vmem:[#allocation4 + $0x8a0] sm:$0xff]
        %v485 = vld [vmem:[#allocation4 + $0x8a8] sm:$0xff]
        %v486 = vld [vmem:[#allocation4 + $0x8b0] sm:$0xff]
        %v487 = vld [vmem:[#allocation4 + $0x8b8] sm:$0xff]
        %v488 = vld [vmem:[#allocation4 + $0x8c0] sm:$0xff]
        %v489 = vld [vmem:[#allocation4 + $0x8c8] sm:$0xff]
        %v490 = vld [vmem:[#allocation4 + $0x8d0] sm:$0xff]
        %v491 = vld [vmem:[#allocation4 + $0x8d8] sm:$0xff]
        %v492 = vld [vmem:[#allocation4 + $0x8e0] sm:$0xff]
        %v493 = vld [vmem:[#allocation4 + $0x8e8] sm:$0xff]
        %v494 = vld [vmem:[#allocation4 + $0x8f0] sm:$0xff]
        %v495 = vld [vmem:[#allocation4 + $0x8f8] sm:$0xff]
        %v496 = vld [vmem:[#allocation4 + $0x900] sm:$0xff]
        %v497 = vld [vmem:[#allocation4 + $0x908] sm:$0xff]
        %v498 = vld [vmem:[#allocation4 + $0x910] sm:$0xff]
        %v499 = vld [vmem:[#allocation4 + $0x918] sm:$0xff]
        %v500 = vld [vmem:[#allocation4 + $0x920] sm:$0xff]
        %v501 = vld [vmem:[#allocation4 + $0x928] sm:$0xff]
        %v502 = vld [vmem:[#allocation4 + $0x930] sm:$0xff]
        %v503 = vld [vmem:[#allocation4 + $0x938] sm:$0xff]
        %v504 = vld [vmem:[#allocation4 + $0x940] sm:$0xff]
        %v505 = vld [vmem:[#allocation4 + $0x948] sm:$0xff]
        %v506 = vld [vmem:[#allocation4 + $0x950] sm:$0xff]
        %v507 = vld [vmem:[#allocation4 + $0x958] sm:$0xff]
        %v508 = vld [vmem:[#allocation4 + $0x960] sm:$0xff]
        %v509 = vld [vmem:[#allocation4 + $0x968] sm:$0xff]
        %v510 = vld [vmem:[#allocation4 + $0x970] sm:$0xff]
        %v511 = vld [vmem:[#allocation4 + $0x978] sm:$0xff]
        %v512 = vld [vmem:[#allocation4 + $0x980] sm:$0xff]
        %v513 = vld [vmem:[#allocation4 + $0x988] sm:$0xff]
        %v514 = vld [vmem:[#allocation4 + $0x990] sm:$0xff]
        %v515 = vld [vmem:[#allocation4 + $0x998] sm:$0xff]
        %v516 = vld [vmem:[#allocation4 + $0x9a0] sm:$0xff]
        %v517 = vld [vmem:[#allocation4 + $0x9a8] sm:$0xff]
        %v518 = vld [vmem:[#allocation4 + $0x9b0] sm:$0xff]
        %v519 = vld [vmem:[#allocation4 + $0x9b8] sm:$0xff]
        %v520 = vld [vmem:[#allocation4 + $0x9c0] sm:$0xff]
        %v521 = vld [vmem:[#allocation4 + $0x9c8] sm:$0xff]
        %v522 = vld [vmem:[#allocation4 + $0x9d0] sm:$0xff]
        %v523 = vld [vmem:[#allocation4 + $0x9d8] sm:$0xff]
        %v524 = vld [vmem:[#allocation4 + $0x9e0] sm:$0xff]
        %v525 = vld [vmem:[#allocation4 + $0x9e8] sm:$0xff]
        %v526 = vld [vmem:[#allocation4 + $0x9f0] sm:$0xff]
        %v527 = vld [vmem:[#allocation4 + $0x9f8] sm:$0xff]
        %v528 = vld [vmem:[#allocation4 + $0xa00] sm:$0xff]
        %v529 = vld [vmem:[#allocation4 + $0xa08] sm:$0xff]
        %v530 = vld [vmem:[#allocation4 + $0xa10] sm:$0xff]
        %v531 = vld [vmem:[#allocation4 + $0xa18] sm:$0xff]
        %v532 = vld [vmem:[#allocation4 + $0xa20] sm:$0xff]
        %v533 = vld [vmem:[#allocation4 + $0xa28] sm:$0xff]
        %v534 = vld [vmem:[#allocation4 + $0xa30] sm:$0xff]
        %v535 = vld [vmem:[#allocation4 + $0xa38] sm:$0xff]
        %v536 = vld [vmem:[#allocation4 + $0xa40] sm:$0xff]
        %v537 = vld [vmem:[#allocation4 + $0xa48] sm:$0xff]
        %v538 = vld [vmem:[#allocation4 + $0xa50] sm:$0xff]
        %v539 = vld [vmem:[#allocation4 + $0xa58] sm:$0xff]
        %v540 = vld [vmem:[#allocation4 + $0xa60] sm:$0xff]
        %v541 = vld [vmem:[#allocation4 + $0xa68] sm:$0xff]
        %v542 = vld [vmem:[#allocation4 + $0xa70] sm:$0xff]
        %v543 = vld [vmem:[#allocation4 + $0xa78] sm:$0xff]
        %v544 = vld [vmem:[#allocation4 + $0xa80] sm:$0xff]
        %v545 = vld [vmem:[#allocation4 + $0xa88] sm:$0xff]
        %v546 = vld [vmem:[#allocation4 + $0xa90] sm:$0xff]
        %v547 = vld [vmem:[#allocation4 + $0xa98] sm:$0xff]
        %v548 = vld [vmem:[#allocation4 + $0xaa0] sm:$0xff]
        %v549 = vld [vmem:[#allocation4 + $0xaa8] sm:$0xff]
        %v550 = vld [vmem:[#allocation4 + $0xab0] sm:$0xff]
        %v551 = vld [vmem:[#allocation4 + $0xab8] sm:$0xff]
        %v552 = vld [vmem:[#allocation4 + $0xac0] sm:$0xff]
        %v553 = vld [vmem:[#allocation4 + $0xac8] sm:$0xff]
        %v554 = vld [vmem:[#allocation4 + $0xad0] sm:$0xff]
        %v555 = vld [vmem:[#allocation4 + $0xad8] sm:$0xff]
        %v556 = vld [vmem:[#allocation4 + $0xae0] sm:$0xff]
        %v557 = vld [vmem:[#allocation4 + $0xae8] sm:$0xff]
        %v558 = vld [vmem:[#allocation4 + $0xaf0] sm:$0xff]
        %v559 = vld [vmem:[#allocation4 + $0xaf8] sm:$0xff]
        %v560 = vld [vmem:[#allocation4 + $0xb00] sm:$0xff]
        %v561 = vld [vmem:[#allocation4 + $0xb08] sm:$0xff]
        %v562 = vld [vmem:[#allocation4 + $0xb10] sm:$0xff]
        %v563 = vld [vmem:[#allocation4 + $0xb18] sm:$0xff]
        %v564 = vld [vmem:[#allocation4 + $0xb20] sm:$0xff]
        %v565 = vld [vmem:[#allocation4 + $0xb28] sm:$0xff]
        %v566 = vld [vmem:[#allocation4 + $0xb30] sm:$0xff]
        %v567 = vld [vmem:[#allocation4 + $0xb38] sm:$0xff]
        %v568 = vld [vmem:[#allocation4 + $0xb40] sm:$0xff]
        %v569 = vld [vmem:[#allocation4 + $0xb48] sm:$0xff]
        %v570 = vld [vmem:[#allocation4 + $0xb50] sm:$0xff]
        %v571 = vld [vmem:[#allocation4 + $0xb58] sm:$0xff]
        %v572 = vld [vmem:[#allocation4 + $0xb60] sm:$0xff]
        %v573 = vld [vmem:[#allocation4 + $0xb68] sm:$0xff]
        %v574 = vld [vmem:[#allocation4 + $0xb70] sm:$0xff]
        %v575 = vld [vmem:[#allocation4 + $0xb78] sm:$0xff]
        %v576 = vld [vmem:[#allocation4 + $0xb80] sm:$0xff]
        %v577 = vld [vmem:[#allocation4 + $0xb88] sm:$0xff]
        %v578 = vld [vmem:[#allocation4 + $0xb90] sm:$0xff]
        %v579 = vld [vmem:[#allocation4 + $0xb98] sm:$0xff]
        %v580 = vld [vmem:[#allocation4 + $0xba0] sm:$0xff]
        %v581 = vld [vmem:[#allocation4 + $0xba8] sm:$0xff]
        %v582 = vld [vmem:[#allocation4 + $0xbb0] sm:$0xff]
        %v583 = vld [vmem:[#allocation4 + $0xbb8] sm:$0xff]
        %v584 = vld [vmem:[#allocation4 + $0xbc0] sm:$0xff]
        %v585 = vld [vmem:[#allocation4 + $0xbc8] sm:$0xff]
        %v586 = vld [vmem:[#allocation4 + $0xbd0] sm:$0xff]
        %v587 = vld [vmem:[#allocation4 + $0xbd8] sm:$0xff]
        %v588 = vld [vmem:[#allocation4 + $0xbe0] sm:$0xff]
        %v589 = vld [vmem:[#allocation4 + $0xbe8] sm:$0xff]
        %v590 = vld [vmem:[#allocation4 + $0xbf0] sm:$0xff]
        %v591 = vld [vmem:[#allocation4 + $0xbf8] sm:$0xff]
        %v592 = vpack.c.bf16 %v214, %v208
        %v593 = vpack.c.bf16 %v215, %v209
        %v594 = vpack.c.bf16 %v216, %v210
        %v595 = vpack.c.bf16 %v217, %v211
        %v596 = vpack.c.bf16 %v218, %v212
        %v597 = vpack.c.bf16 %v219, %v213
        %v598 = vpack.c.bf16 %v226, %v220
        %v599 = vpack.c.bf16 %v227, %v221
        %v600 = vpack.c.bf16 %v228, %v222
        %v601 = vpack.c.bf16 %v229, %v223
        %v602 = vpack.c.bf16 %v230, %v224
        %v603 = vpack.c.bf16 %v231, %v225
        %v604 = vpack.c.bf16 %v238, %v232
        %v605 = vpack.c.bf16 %v239, %v233
        %v606 = vpack.c.bf16 %v240, %v234
        %v607 = vpack.c.bf16 %v241, %v235
        %v608 = vpack.c.bf16 %v242, %v236
        %v609 = vpack.c.bf16 %v243, %v237
        %v610 = vpack.c.bf16 %v250, %v244
        %v611 = vpack.c.bf16 %v251, %v245
        %v612 = vpack.c.bf16 %v252, %v246
        %v613 = vpack.c.bf16 %v253, %v247
        %v614 = vpack.c.bf16 %v254, %v248
        %v615 = vpack.c.bf16 %v255, %v249
        %v616 = vpack.c.bf16 %v262, %v256
        %v617 = vpack.c.bf16 %v263, %v257
        %v618 = vpack.c.bf16 %v264, %v258
        %v619 = vpack.c.bf16 %v265, %v259
        %v620 = vpack.c.bf16 %v266, %v260
        %v621 = vpack.c.bf16 %v267, %v261
        %v622 = vpack.c.bf16 %v274, %v268
        %v623 = vpack.c.bf16 %v275, %v269
        %v624 = vpack.c.bf16 %v276, %v270
        %v625 = vpack.c.bf16 %v277, %v271
        %v626 = vpack.c.bf16 %v278, %v272
        %v627 = vpack.c.bf16 %v279, %v273
        %v628 = vpack.c.bf16 %v286, %v280
        %v629 = vpack.c.bf16 %v287, %v281
        %v630 = vpack.c.bf16 %v288, %v282
        %v631 = vpack.c.bf16 %v289, %v283
        %v632 = vpack.c.bf16 %v290, %v284
        %v633 = vpack.c.bf16 %v291, %v285
        %v634 = vpack.c.bf16 %v298, %v292
        %v635 = vpack.c.bf16 %v299, %v293
        %v636 = vpack.c.bf16 %v300, %v294
        %v637 = vpack.c.bf16 %v301, %v295
        %v638 = vpack.c.bf16 %v302, %v296
        %v639 = vpack.c.bf16 %v303, %v297
        %v640 = vpack.c.bf16 %v310, %v304
        %v641 = vpack.c.bf16 %v311, %v305
        %v642 = vpack.c.bf16 %v312, %v306
        %v643 = vpack.c.bf16 %v313, %v307
        %v644 = vpack.c.bf16 %v314, %v308
        %v645 = vpack.c.bf16 %v315, %v309
        %v646 = vpack.c.bf16 %v322, %v316
        %v647 = vpack.c.bf16 %v323, %v317
        %v648 = vpack.c.bf16 %v324, %v318
        %v649 = vpack.c.bf16 %v325, %v319
        %v650 = vpack.c.bf16 %v326, %v320
        %v651 = vpack.c.bf16 %v327, %v321
        %v652 = vpack.c.bf16 %v334, %v328
        %v653 = vpack.c.bf16 %v335, %v329
        %v654 = vpack.c.bf16 %v336, %v330
        %v655 = vpack.c.bf16 %v337, %v331
        %v656 = vpack.c.bf16 %v338, %v332
        %v657 = vpack.c.bf16 %v339, %v333
        %v658 = vpack.c.bf16 %v346, %v340
        %v659 = vpack.c.bf16 %v347, %v341
        %v660 = vpack.c.bf16 %v348, %v342
        %v661 = vpack.c.bf16 %v349, %v343
        %v662 = vpack.c.bf16 %v350, %v344
        %v663 = vpack.c.bf16 %v351, %v345
        %v664 = vpack.c.bf16 %v358, %v352
        %v665 = vpack.c.bf16 %v359, %v353
        %v666 = vpack.c.bf16 %v360, %v354
        %v667 = vpack.c.bf16 %v361, %v355
        %v668 = vpack.c.bf16 %v362, %v356
        %v669 = vpack.c.bf16 %v363, %v357
        %v670 = vpack.c.bf16 %v370, %v364
        %v671 = vpack.c.bf16 %v371, %v365
        %v672 = vpack.c.bf16 %v372, %v366
        %v673 = vpack.c.bf16 %v373, %v367
        %v674 = vpack.c.bf16 %v374, %v368
        %v675 = vpack.c.bf16 %v375, %v369
        %v676 = vpack.c.bf16 %v382, %v376
        %v677 = vpack.c.bf16 %v383, %v377
        %v678 = vpack.c.bf16 %v384, %v378
        %v679 = vpack.c.bf16 %v385, %v379
        %v680 = vpack.c.bf16 %v386, %v380
        %v681 = vpack.c.bf16 %v387, %v381
        %v682 = vpack.c.bf16 %v394, %v388
        %v683 = vpack.c.bf16 %v395, %v389
        %v684 = vpack.c.bf16 %v396, %v390
        %v685 = vpack.c.bf16 %v397, %v391
        %v686 = vpack.c.bf16 %v398, %v392
        %v687 = vpack.c.bf16 %v399, %v393
        %v688 = vpack.c.bf16 %v406, %v400
        %v689 = vpack.c.bf16 %v407, %v401
        %v690 = vpack.c.bf16 %v408, %v402
        %v691 = vpack.c.bf16 %v409, %v403
        %v692 = vpack.c.bf16 %v410, %v404
        %v693 = vpack.c.bf16 %v411, %v405
        %v694 = vpack.c.bf16 %v418, %v412
        %v695 = vpack.c.bf16 %v419, %v413
        %v696 = vpack.c.bf16 %v420, %v414
        %v697 = vpack.c.bf16 %v421, %v415
        %v698 = vpack.c.bf16 %v422, %v416
        %v699 = vpack.c.bf16 %v423, %v417
        %v700 = vpack.c.bf16 %v430, %v424
        %v701 = vpack.c.bf16 %v431, %v425
        %v702 = vpack.c.bf16 %v432, %v426
        %v703 = vpack.c.bf16 %v433, %v427
        %v704 = vpack.c.bf16 %v434, %v428
        %v705 = vpack.c.bf16 %v435, %v429
        %v706 = vpack.c.bf16 %v442, %v436
        %v707 = vpack.c.bf16 %v443, %v437
        %v708 = vpack.c.bf16 %v444, %v438
        %v709 = vpack.c.bf16 %v445, %v439
        %v710 = vpack.c.bf16 %v446, %v440
        %v711 = vpack.c.bf16 %v447, %v441
        %v712 = vpack.c.bf16 %v454, %v448
        %v713 = vpack.c.bf16 %v455, %v449
        %v714 = vpack.c.bf16 %v456, %v450
        %v715 = vpack.c.bf16 %v457, %v451
        %v716 = vpack.c.bf16 %v458, %v452
        %v717 = vpack.c.bf16 %v459, %v453
        %v718 = vpack.c.bf16 %v466, %v460
        %v719 = vpack.c.bf16 %v467, %v461
        %v720 = vpack.c.bf16 %v468, %v462
        %v721 = vpack.c.bf16 %v469, %v463
        %v722 = vpack.c.bf16 %v470, %v464
        %v723 = vpack.c.bf16 %v471, %v465
        %v724 = vpack.c.bf16 %v478, %v472
        %v725 = vpack.c.bf16 %v479, %v473
        %v726 = vpack.c.bf16 %v480, %v474
        %v727 = vpack.c.bf16 %v481, %v475
        %v728 = vpack.c.bf16 %v482, %v476
        %v729 = vpack.c.bf16 %v483, %v477
        %v730 = vpack.c.bf16 %v490, %v484
        %v731 = vpack.c.bf16 %v491, %v485
        %v732 = vpack.c.bf16 %v492, %v486
        %v733 = vpack.c.bf16 %v493, %v487
        %v734 = vpack.c.bf16 %v494, %v488
        %v735 = vpack.c.bf16 %v495, %v489
        %v736 = vpack.c.bf16 %v502, %v496
        %v737 = vpack.c.bf16 %v503, %v497
        %v738 = vpack.c.bf16 %v504, %v498
        %v739 = vpack.c.bf16 %v505, %v499
        %v740 = vpack.c.bf16 %v506, %v500
        %v741 = vpack.c.bf16 %v507, %v501
        %v742 = vpack.c.bf16 %v514, %v508
        %v743 = vpack.c.bf16 %v515, %v509
        %v744 = vpack.c.bf16 %v516, %v510
        %v745 = vpack.c.bf16 %v517, %v511
        %v746 = vpack.c.bf16 %v518, %v512
        %v747 = vpack.c.bf16 %v519, %v513
        %v748 = vpack.c.bf16 %v526, %v520
        %v749 = vpack.c.bf16 %v527, %v521
        %v750 = vpack.c.bf16 %v528, %v522
        %v751 = vpack.c.bf16 %v529, %v523
        %v752 = vpack.c.bf16 %v530, %v524
        %v753 = vpack.c.bf16 %v531, %v525
        %v754 = vpack.c.bf16 %v538, %v532
        %v755 = vpack.c.bf16 %v539, %v533
        %v756 = vpack.c.bf16 %v540, %v534
        %v757 = vpack.c.bf16 %v541, %v535
        %v758 = vpack.c.bf16 %v542, %v536
        %v759 = vpack.c.bf16 %v543, %v537
        %v760 = vpack.c.bf16 %v550, %v544
        %v761 = vpack.c.bf16 %v551, %v545
        %v762 = vpack.c.bf16 %v552, %v546
        %v763 = vpack.c.bf16 %v553, %v547
        %v764 = vpack.c.bf16 %v554, %v548
        %v765 = vpack.c.bf16 %v555, %v549
        %v766 = vpack.c.bf16 %v562, %v556
        %v767 = vpack.c.bf16 %v563, %v557
        %v768 = vpack.c.bf16 %v564, %v558
        %v769 = vpack.c.bf16 %v565, %v559
        %v770 = vpack.c.bf16 %v566, %v560
        %v771 = vpack.c.bf16 %v567, %v561
        %v772 = vpack.c.bf16 %v574, %v568
        %v773 = vpack.c.bf16 %v575, %v569
        %v774 = vpack.c.bf16 %v576, %v570
        %v775 = vpack.c.bf16 %v577, %v571
        %v776 = vpack.c.bf16 %v578, %v572
        %v777 = vpack.c.bf16 %v579, %v573
        %v778 = vpack.c.bf16 %v586, %v580
        %v779 = vpack.c.bf16 %v587, %v581
        %v780 = vpack.c.bf16 %v588, %v582
        %v781 = vpack.c.bf16 %v589, %v583
        %v782 = vpack.c.bf16 %v590, %v584
        %v783 = vpack.c.bf16 %v591, %v585
        %784 = vmatprep.subr.bf16.mxu0 %v593
        %785 = vmatpush1.bf16.msra.mxu0 %v592
        %786 = vmatprep.subr.bf16.mxu0 %v599
        %787 = vmatpush1.bf16.msra.mxu0 %v598
        %788 = vmatprep.subr.bf16.mxu0 %v605
        %789 = vmatpush1.bf16.msra.mxu0 %v604
        %790 = vmatprep.subr.bf16.mxu0 %v611
        %791 = vmatpush1.bf16.msra.mxu0 %v610
        %792 = vmatprep.subr.bf16.mxu0 %v617
        %793 = vmatpush1.bf16.msra.mxu0 %v616
        %794 = vmatprep.subr.bf16.mxu0 %v623
        %795 = vmatpush1.bf16.msra.mxu0 %v622
        %796 = vmatprep.subr.bf16.mxu0 %v629
        %797 = vmatpush1.bf16.msra.mxu0 %v628
        %798 = vmatprep.subr.bf16.mxu0 %v635
        %799 = vmatpush1.bf16.msra.mxu0 %v634
        %800 = vmatprep.subr.bf16.mxu0 %v641
        %801 = vmatpush1.bf16.msra.mxu0 %v640
        %802 = vmatprep.subr.bf16.mxu0 %v647
        %803 = vmatpush1.bf16.msra.mxu0 %v646
        %804 = vmatprep.subr.bf16.mxu0 %v653
        %805 = vmatpush1.bf16.msra.mxu0 %v652
        %806 = vmatprep.subr.bf16.mxu0 %v659
        %807 = vmatpush1.bf16.msra.mxu0 %v658
        %808 = vmatprep.subr.bf16.mxu0 %v665
        %809 = vmatpush1.bf16.msra.mxu0 %v664
        %810 = vmatprep.subr.bf16.mxu0 %v671
        %811 = vmatpush1.bf16.msra.mxu0 %v670
        %812 = vmatprep.subr.bf16.mxu0 %v677
        %813 = vmatpush1.bf16.msra.mxu0 %v676
        %814 = vmatprep.subr.bf16.mxu0 %v683
        %815 = vmatpush1.bf16.msra.mxu0 %v682
        %816 = vmatprep.mubr.bf16.mxu0 %v201
        %817 = vmatmul.mubr.bf16.gmra.mrb[0].mxu0 %v200
        %v818 = vpop.f32.mrb[0].mxu0
        %v819 = vadd.f32 0.0, %v818
        %v820 = vpop.f32.mrb[0].mxu0
        %v821 = vadd.f32 0.0, %v820
        %v822 = vpop.f32.mrb[0].mxu0
        %v823 = vadd.f32 0.0, %v822
        %v824 = vpop.f32.mrb[0].mxu0
        %v825 = vadd.f32 0.0, %v824
        %826 = vmatprep.mubr.bf16.mxu0 %v205
        %827 = vmatmul.mubr.bf16.gmra.mrb[0].mxu0 %v204
        %v828 = vpop.f32.mrb[0].mxu0
        %v829 = vadd.f32 0.0, %v828
        %v830 = vpop.f32.mrb[0].mxu0
        %v831 = vadd.f32 0.0, %v830
        %v832 = vpop.f32.mrb[0].mxu0
        %v833 = vadd.f32 0.0, %v832
        %v834 = vpop.f32.mrb[0].mxu0
        %v835 = vadd.f32 0.0, %v834
        %836 = vdwg.mxu0
        %837 = vmatprep.subr.bf16.mxu0 %v689
        %838 = vmatpush1.bf16.msra.mxu0 %v688
        %839 = vmatprep.subr.bf16.mxu0 %v695
        %840 = vmatpush1.bf16.msra.mxu0 %v694
        %841 = vmatprep.subr.bf16.mxu0 %v701
        %842 = vmatpush1.bf16.msra.mxu0 %v700
        %843 = vmatprep.subr.bf16.mxu0 %v707
        %844 = vmatpush1.bf16.msra.mxu0 %v706
        %845 = vmatprep.subr.bf16.mxu0 %v713
        %846 = vmatpush1.bf16.msra.mxu0 %v712
        %847 = vmatprep.subr.bf16.mxu0 %v719
        %848 = vmatpush1.bf16.msra.mxu0 %v718
        %849 = vmatprep.subr.bf16.mxu0 %v725
        %850 = vmatpush1.bf16.msra.mxu0 %v724
        %851 = vmatprep.subr.bf16.mxu0 %v731
        %852 = vmatpush1.bf16.msra.mxu0 %v730
        %853 = vmatprep.subr.bf16.mxu0 %v737
        %854 = vmatpush1.bf16.msra.mxu0 %v736
        %855 = vmatprep.subr.bf16.mxu0 %v743
        %856 = vmatpush1.bf16.msra.mxu0 %v742
        %857 = vmatprep.subr.bf16.mxu0 %v749
        %858 = vmatpush1.bf16.msra.mxu0 %v748
        %859 = vmatprep.subr.bf16.mxu0 %v755
        %860 = vmatpush1.bf16.msra.mxu0 %v754
        %861 = vmatprep.subr.bf16.mxu0 %v761
        %862 = vmatpush1.bf16.msra.mxu0 %v760
        %863 = vmatprep.subr.bf16.mxu0 %v767
        %864 = vmatpush1.bf16.msra.mxu0 %v766
        %865 = vmatprep.subr.bf16.mxu0 %v773
        %866 = vmatpush1.bf16.msra.mxu0 %v772
        %867 = vmatprep.subr.bf16.mxu0 %v779
        %868 = vmatpush1.bf16.msra.mxu0 %v778
        %869 = vmatprep.mubr.bf16.mxu0 %v203
        %870 = vmatmul.mubr.bf16.gmra.mrb[0].mxu0 %v202
        %v871 = vpop.f32.mrb[0].mxu0
        %v872 = vadd.f32 %v819, %v871
        %v873 = vpop.f32.mrb[0].mxu0
        %v874 = vadd.f32 %v821, %v873
        %v875 = vpop.f32.mrb[0].mxu0
        %v876 = vadd.f32 %v823, %v875
        %v877 = vpop.f32.mrb[0].mxu0
        %v878 = vadd.f32 %v825, %v877
        %879 = vmatprep.mubr.bf16.mxu0 %v207
        %880 = vmatmul.mubr.bf16.gmra.mrb[0].mxu0 %v206
        %v881 = vpop.f32.mrb[0].mxu0
        %v882 = vadd.f32 %v829, %v881
        %v883 = vpop.f32.mrb[0].mxu0
        %v884 = vadd.f32 %v831, %v883
        %v885 = vpop.f32.mrb[0].mxu0
        %v886 = vadd.f32 %v833, %v885
        %v887 = vpop.f32.mrb[0].mxu0
        %v888 = vadd.f32 %v835, %v887
        %889 = vdwg.mxu0
        %890 = vmatprep.subr.bf16.mxu0 %v595
        %891 = vmatpush1.bf16.msra.mxu0 %v594
        %892 = vmatprep.subr.bf16.mxu0 %v601
        %893 = vmatpush1.bf16.msra.mxu0 %v600
        %894 = vmatprep.subr.bf16.mxu0 %v607
        %895 = vmatpush1.bf16.msra.mxu0 %v606
        %896 = vmatprep.subr.bf16.mxu0 %v613
        %897 = vmatpush1.bf16.msra.mxu0 %v612
        %898 = vmatprep.subr.bf16.mxu0 %v619
        %899 = vmatpush1.bf16.msra.mxu0 %v618
        %900 = vmatprep.subr.bf16.mxu0 %v625
        %901 = vmatpush1.bf16.msra.mxu0 %v624
        %902 = vmatprep.subr.bf16.mxu0 %v631
        %903 = vmatpush1.bf16.msra.mxu0 %v630
        %904 = vmatprep.subr.bf16.mxu0 %v637
        %905 = vmatpush1.bf16.msra.mxu0 %v636
        %906 = vmatprep.subr.bf16.mxu0 %v643
        %907 = vmatpush1.bf16.msra.mxu0 %v642
        %908 = vmatprep.subr.bf16.mxu0 %v649
        %909 = vmatpush1.bf16.msra.mxu0 %v648
        %910 = vmatprep.subr.bf16.mxu0 %v655
        %911 = vmatpush1.bf16.msra.mxu0 %v654
        %912 = vmatprep.subr.bf16.mxu0 %v661
        %913 = vmatpush1.bf16.msra.mxu0 %v660
        %914 = vmatprep.subr.bf16.mxu0 %v667
        %915 = vmatpush1.bf16.msra.mxu0 %v666
        %916 = vmatprep.subr.bf16.mxu0 %v673
        %917 = vmatpush1.bf16.msra.mxu0 %v672
        %918 = vmatprep.subr.bf16.mxu0 %v679
        %919 = vmatpush1.bf16.msra.mxu0 %v678
        %920 = vmatprep.subr.bf16.mxu0 %v685
        %921 = vmatpush1.bf16.msra.mxu0 %v684
        %922 = vmatprep.mubr.bf16.mxu0 %v201
        %923 = vmatmul.mubr.bf16.gmra.mrb[0].mxu0 %v200
        %v924 = vpop.f32.mrb[0].mxu0
        %v925 = vadd.f32 0.0, %v924
        %v926 = vpop.f32.mrb[0].mxu0
        %v927 = vadd.f32 0.0, %v926
        %v928 = vpop.f32.mrb[0].mxu0
        %v929 = vadd.f32 0.0, %v928
        %v930 = vpop.f32.mrb[0].mxu0
        %v931 = vadd.f32 0.0, %v930
        %932 = vmatprep.mubr.bf16.mxu0 %v205
        %933 = vmatmul.mubr.bf16.gmra.mrb[0].mxu0 %v204
        %v934 = vpop.f32.mrb[0].mxu0
        %v935 = vadd.f32 0.0, %v934
        %v936 = vpop.f32.mrb[0].mxu0
        %v937 = vadd.f32 0.0, %v936
        %v938 = vpop.f32.mrb[0].mxu0
        %v939 = vadd.f32 0.0, %v938
        %v940 = vpop.f32.mrb[0].mxu0
        %v941 = vadd.f32 0.0, %v940
        %942 = vdwg.mxu0
        %943 = vmatprep.subr.bf16.mxu0 %v691
        %944 = vmatpush1.bf16.msra.mxu0 %v690
        %945 = vmatprep.subr.bf16.mxu0 %v697
        %946 = vmatpush1.bf16.msra.mxu0 %v696
        %947 = vmatprep.subr.bf16.mxu0 %v703
        %948 = vmatpush1.bf16.msra.mxu0 %v702
        %949 = vmatprep.subr.bf16.mxu0 %v709
        %950 = vmatpush1.bf16.msra.mxu0 %v708
        %951 = vmatprep.subr.bf16.mxu0 %v715
        %952 = vmatpush1.bf16.msra.mxu0 %v714
        %953 = vmatprep.subr.bf16.mxu0 %v721
        %954 = vmatpush1.bf16.msra.mxu0 %v720
        %955 = vmatprep.subr.bf16.mxu0 %v727
        %956 = vmatpush1.bf16.msra.mxu0 %v726
        %957 = vmatprep.subr.bf16.mxu0 %v733
        %958 = vmatpush1.bf16.msra.mxu0 %v732
        %959 = vmatprep.subr.bf16.mxu0 %v739
        %960 = vmatpush1.bf16.msra.mxu0 %v738
        %961 = vmatprep.subr.bf16.mxu0 %v745
        %962 = vmatpush1.bf16.msra.mxu0 %v744
        %963 = vmatprep.subr.bf16.mxu0 %v751
        %964 = vmatpush1.bf16.msra.mxu0 %v750
        %965 = vmatprep.subr.bf16.mxu0 %v757
        %966 = vmatpush1.bf16.msra.mxu0 %v756
        %967 = vmatprep.subr.bf16.mxu0 %v763
        %968 = vmatpush1.bf16.msra.mxu0 %v762
        %969 = vmatprep.subr.bf16.mxu0 %v769
        %970 = vmatpush1.bf16.msra.mxu0 %v768
        %971 = vmatprep.subr.bf16.mxu0 %v775
        %972 = vmatpush1.bf16.msra.mxu0 %v774
        %973 = vmatprep.subr.bf16.mxu0 %v781
        %974 = vmatpush1.bf16.msra.mxu0 %v780
        %975 = vmatprep.mubr.bf16.mxu0 %v203
        %976 = vmatmul.mubr.bf16.gmra.mrb[0].mxu0 %v202
        %v977 = vpop.f32.mrb[0].mxu0
        %v978 = vadd.f32 %v925, %v977
        %v979 = vpop.f32.mrb[0].mxu0
        %v980 = vadd.f32 %v927, %v979
        %v981 = vpop.f32.mrb[0].mxu0
        %v982 = vadd.f32 %v929, %v981
        %v983 = vpop.f32.mrb[0].mxu0
        %v984 = vadd.f32 %v931, %v983
        %985 = vmatprep.mubr.bf16.mxu0 %v207
        %986 = vmatmul.mubr.bf16.gmra.mrb[0].mxu0 %v206
        %v987 = vpop.f32.mrb[0].mxu0
        %v988 = vadd.f32 %v935, %v987
        %v989 = vpop.f32.mrb[0].mxu0
        %v990 = vadd.f32 %v937, %v989
        %v991 = vpop.f32.mrb[0].mxu0
        %v992 = vadd.f32 %v939, %v991
        %v993 = vpop.f32.mrb[0].mxu0
        %v994 = vadd.f32 %v941, %v993
        %995 = vdwg.mxu0
        %996 = vmatprep.subr.bf16.mxu0 %v597
        %997 = vmatpush1.bf16.msra.mxu0 %v596
        %998 = vmatprep.subr.bf16.mxu0 %v603
        %999 = vmatpush1.bf16.msra.mxu0 %v602
        %1000 = vmatprep.subr.bf16.mxu0 %v609
        %1001 = vmatpush1.bf16.msra.mxu0 %v608
        %1002 = vmatprep.subr.bf16.mxu0 %v615
        %1003 = vmatpush1.bf16.msra.mxu0 %v614
        %1004 = vmatprep.subr.bf16.mxu0 %v621
        %1005 = vmatpush1.bf16.msra.mxu0 %v620
        %1006 = vmatprep.subr.bf16.mxu0 %v627
        %1007 = vmatpush1.bf16.msra.mxu0 %v626
        %1008 = vmatprep.subr.bf16.mxu0 %v633
        %1009 = vmatpush1.bf16.msra.mxu0 %v632
        %1010 = vmatprep.subr.bf16.mxu0 %v639
        %1011 = vmatpush1.bf16.msra.mxu0 %v638
        %1012 = vmatprep.subr.bf16.mxu0 %v645
        %1013 = vmatpush1.bf16.msra.mxu0 %v644
        %1014 = vmatprep.subr.bf16.mxu0 %v651
        %1015 = vmatpush1.bf16.msra.mxu0 %v650
        %1016 = vmatprep.subr.bf16.mxu0 %v657
        %1017 = vmatpush1.bf16.msra.mxu0 %v656
        %1018 = vmatprep.subr.bf16.mxu0 %v663
        %1019 = vmatpush1.bf16.msra.mxu0 %v662
        %1020 = vmatprep.subr.bf16.mxu0 %v669
        %1021 = vmatpush1.bf16.msra.mxu0 %v668
        %1022 = vmatprep.subr.bf16.mxu0 %v675
        %1023 = vmatpush1.bf16.msra.mxu0 %v674
        %1024 = vmatprep.subr.bf16.mxu0 %v681
        %1025 = vmatpush1.bf16.msra.mxu0 %v680
        %1026 = vmatprep.subr.bf16.mxu0 %v687
        %1027 = vmatpush1.bf16.msra.mxu0 %v686
        %1028 = vmatprep.mubr.bf16.mxu0 %v201
        %1029 = vmatmul.mubr.bf16.gmra.mrb[0].mxu0 %v200
        %v1030 = vpop.f32.mrb[0].mxu0
        %v1031 = vadd.f32 0.0, %v1030
        %v1032 = vpop.f32.mrb[0].mxu0
        %v1033 = vadd.f32 0.0, %v1032
        %v1034 = vpop.f32.mrb[0].mxu0
        %v1035 = vadd.f32 0.0, %v1034
        %v1036 = vpop.f32.mrb[0].mxu0
        %v1037 = vadd.f32 0.0, %v1036
        %1038 = vmatprep.mubr.bf16.mxu0 %v205
        %1039 = vmatmul.mubr.bf16.gmra.mrb[0].mxu0 %v204
        %v1040 = vpop.f32.mrb[0].mxu0
        %v1041 = vadd.f32 0.0, %v1040
        %v1042 = vpop.f32.mrb[0].mxu0
        %v1043 = vadd.f32 0.0, %v1042
        %v1044 = vpop.f32.mrb[0].mxu0
        %v1045 = vadd.f32 0.0, %v1044
        %v1046 = vpop.f32.mrb[0].mxu0
        %v1047 = vadd.f32 0.0, %v1046
        %1048 = vdwg.mxu0
        %1049 = vmatprep.subr.bf16.mxu0 %v693
        %1050 = vmatpush1.bf16.msra.mxu0 %v692
        %1051 = vmatprep.subr.bf16.mxu0 %v699
        %1052 = vmatpush1.bf16.msra.mxu0 %v698
        %1053 = vmatprep.subr.bf16.mxu0 %v705
        %1054 = vmatpush1.bf16.msra.mxu0 %v704
        %1055 = vmatprep.subr.bf16.mxu0 %v711
        %1056 = vmatpush1.bf16.msra.mxu0 %v710
        %1057 = vmatprep.subr.bf16.mxu0 %v717
        %1058 = vmatpush1.bf16.msra.mxu0 %v716
        %1059 = vmatprep.subr.bf16.mxu0 %v723
        %1060 = vmatpush1.bf16.msra.mxu0 %v722
        %1061 = vmatprep.subr.bf16.mxu0 %v729
        %1062 = vmatpush1.bf16.msra.mxu0 %v728
        %1063 = vmatprep.subr.bf16.mxu0 %v735
        %1064 = vmatpush1.bf16.msra.mxu0 %v734
        %1065 = vmatprep.subr.bf16.mxu0 %v741
        %1066 = vmatpush1.bf16.msra.mxu0 %v740
        %1067 = vmatprep.subr.bf16.mxu0 %v747
        %1068 = vmatpush1.bf16.msra.mxu0 %v746
        %1069 = vmatprep.subr.bf16.mxu0 %v753
        %1070 = vmatpush1.bf16.msra.mxu0 %v752
        %1071 = vmatprep.subr.bf16.mxu0 %v759
        %1072 = vmatpush1.bf16.msra.mxu0 %v758
        %1073 = vmatprep.subr.bf16.mxu0 %v765
        %1074 = vmatpush1.bf16.msra.mxu0 %v764
        %1075 = vmatprep.subr.bf16.mxu0 %v771
        %1076 = vmatpush1.bf16.msra.mxu0 %v770
        %1077 = vmatprep.subr.bf16.mxu0 %v777
        %1078 = vmatpush1.bf16.msra.mxu0 %v776
        %1079 = vmatprep.subr.bf16.mxu0 %v783
        %1080 = vmatpush1.bf16.msra.mxu0 %v782
        %1081 = vmatprep.mubr.bf16.mxu0 %v203
        %1082 = vmatmul.mubr.bf16.gmra.mrb[0].mxu0 %v202
        %v1083 = vpop.f32.mrb[0].mxu0
        %v1084 = vadd.f32 %v1031, %v1083
        %v1085 = vpop.f32.mrb[0].mxu0
        %v1086 = vadd.f32 %v1033, %v1085
        %v1087 = vpop.f32.mrb[0].mxu0
        %v1088 = vadd.f32 %v1035, %v1087
        %v1089 = vpop.f32.mrb[0].mxu0
        %v1090 = vadd.f32 %v1037, %v1089
        %1091 = vmatprep.mubr.bf16.mxu0 %v207
        %1092 = vmatmul.mubr.bf16.gmra.mrb[0].mxu0 %v206
        %v1093 = vpop.f32.mrb[0].mxu0
        %v1094 = vadd.f32 %v1041, %v1093
        %v1095 = vpop.f32.mrb[0].mxu0
        %v1096 = vadd.f32 %v1043, %v1095
        %v1097 = vpop.f32.mrb[0].mxu0
        %v1098 = vadd.f32 %v1045, %v1097
        %v1099 = vpop.f32.mrb[0].mxu0
        %v1100 = vadd.f32 %v1047, %v1099
        %1101 = vdwg.mxu0
        %v1102 = vmul.f32 %v872, %v872
        %v1103 = vmul.f32 %v874, %v874
        %v1104 = vmul.f32 %v978, %v978
        %v1105 = vmul.f32 %v980, %v980
        %v1106 = vmul.f32 %v1084, %v1084
        %v1107 = vmul.f32 %v1086, %v1086
        %v1108 = vmul.f32 %v876, %v876
        %v1109 = vmul.f32 %v878, %v878
        %v1110 = vmul.f32 %v982, %v982
        %v1111 = vmul.f32 %v984, %v984
        %v1112 = vmul.f32 %v1088, %v1088
        %v1113 = vmul.f32 %v1090, %v1090
        %v1114 = vmul.f32 %v882, %v882
        %v1115 = vmul.f32 %v884, %v884
        %v1116 = vmul.f32 %v988, %v988
        %v1117 = vmul.f32 %v990, %v990
        %v1118 = vmul.f32 %v1094, %v1094
        %v1119 = vmul.f32 %v1096, %v1096
        %v1120 = vmul.f32 %v886, %v886
        %v1121 = vmul.f32 %v888, %v888
        %v1122 = vmul.f32 %v992, %v992
        %v1123 = vmul.f32 %v994, %v994
        %v1124 = vmul.f32 %v1098, %v1098
        %v1125 = vmul.f32 %v1100, %v1100
        %v1126 = vadd.f32 %v1102, %v1103
        %v1127 = vadd.f32 %v1126, %v1104
        %v1128 = vadd.f32 %v1127, %v1105
        %v1129 = vadd.f32 %v1128, %v1106
        %v1130 = vadd.f32 %v1129, %v1107
        %1131 = vadd.xlane.f32.xlu0 %v1130
        %v1132 = vpop.xlane.xlu0 %1131
        %v1133 = vadd.f32 %v1108, %v1109
        %v1134 = vadd.f32 %v1133, %v1110
        %v1135 = vadd.f32 %v1134, %v1111
        %v1136 = vadd.f32 %v1135, %v1112
        %v1137 = vadd.f32 %v1136, %v1113
        %1138 = vadd.xlane.f32.xlu0 %v1137
        %v1139 = vpop.xlane.xlu0 %1138
        %v1140 = vadd.f32 %v1114, %v1115
        %v1141 = vadd.f32 %v1140, %v1116
        %v1142 = vadd.f32 %v1141, %v1117
        %v1143 = vadd.f32 %v1142, %v1118
        %v1144 = vadd.f32 %v1143, %v1119
        %1145 = vadd.xlane.f32.xlu0 %v1144
        %v1146 = vpop.xlane.xlu0 %1145
        %v1147 = vadd.f32 %v1120, %v1121
        %v1148 = vadd.f32 %v1147, %v1122
        %v1149 = vadd.f32 %v1148, %v1123
        %v1150 = vadd.f32 %v1149, %v1124
        %v1151 = vadd.f32 %v1150, %v1125
        %1152 = vadd.xlane.f32.xlu0 %v1151
        %v1153 = vpop.xlane.xlu0 %1152
        %v1154 = vrsqrt.pop %v1132
        %v1155 = vrsqrt.pop %v1139
        %v1156 = vrsqrt.pop %v1146
        %v1157 = vrsqrt.pop %v1153
        %v1158 = vmul.f32 %v872, %v1154
        %v1159 = vmul.f32 %v874, %v1154
        %v1160 = vmul.f32 %v978, %v1154
        %v1161 = vmul.f32 %v980, %v1154
        %v1162 = vmul.f32 %v1084, %v1154
        %v1163 = vmul.f32 %v1086, %v1154
        %v1164 = vmul.f32 %v876, %v1155
        %v1165 = vmul.f32 %v878, %v1155
        %v1166 = vmul.f32 %v982, %v1155
        %v1167 = vmul.f32 %v984, %v1155
        %v1168 = vmul.f32 %v1088, %v1155
        %v1169 = vmul.f32 %v1090, %v1155
        %v1170 = vmul.f32 %v882, %v1156
        %v1171 = vmul.f32 %v884, %v1156
        %v1172 = vmul.f32 %v988, %v1156
        %v1173 = vmul.f32 %v990, %v1156
        %v1174 = vmul.f32 %v1094, %v1156
        %v1175 = vmul.f32 %v1096, %v1156
        %v1176 = vmul.f32 %v886, %v1157
        %v1177 = vmul.f32 %v888, %v1157
        %v1178 = vmul.f32 %v992, %v1157
        %v1179 = vmul.f32 %v994, %v1157
        %v1180 = vmul.f32 %v1098, %v1157
        %v1181 = vmul.f32 %v1100, %v1157
        %v1182 = vpack.c.bf16 %v1164, %v1158
        %v1183 = vpack.c.bf16 %v1165, %v1159
        %v1184 = vpack.c.bf16 %v1166, %v1160
        %v1185 = vpack.c.bf16 %v1167, %v1161
        %v1186 = vpack.c.bf16 %v1168, %v1162
        %v1187 = vpack.c.bf16 %v1169, %v1163
        %v1188 = vpack.c.bf16 %v1176, %v1170
        %v1189 = vpack.c.bf16 %v1177, %v1171
        %v1190 = vpack.c.bf16 %v1178, %v1172
        %v1191 = vpack.c.bf16 %v1179, %v1173
        %v1192 = vpack.c.bf16 %v1180, %v1174
        %v1193 = vpack.c.bf16 %v1181, %v1175
        %v1206 = vunpack.c.l.b16 %v1182
        %v1207 = vunpack.c.l.b16 %v1183
        %v1208 = vunpack.c.l.b16 %v1184
        %v1209 = vunpack.c.l.b16 %v1185
        %v1210 = vunpack.c.l.b16 %v1186
        %v1211 = vunpack.c.l.b16 %v1187
        %v1212 = vunpack.c.h.b16 %v1182
        %v1213 = vunpack.c.h.b16 %v1183
        %v1214 = vunpack.c.h.b16 %v1184
        %v1215 = vunpack.c.h.b16 %v1185
        %v1216 = vunpack.c.h.b16 %v1186
        %v1217 = vunpack.c.h.b16 %v1187
        %v1218 = vunpack.c.l.b16 %v1188
        %v1219 = vunpack.c.l.b16 %v1189
        %v1220 = vunpack.c.l.b16 %v1190
        %v1221 = vunpack.c.l.b16 %v1191
        %v1222 = vunpack.c.l.b16 %v1192
        %v1223 = vunpack.c.l.b16 %v1193
        %v1224 = vunpack.c.h.b16 %v1188
        %v1225 = vunpack.c.h.b16 %v1189
        %v1226 = vunpack.c.h.b16 %v1190
        %v1227 = vunpack.c.h.b16 %v1191
        %v1228 = vunpack.c.h.b16 %v1192
        %v1229 = vunpack.c.h.b16 %v1193
        %v1230 = vpack.c.b16 %v1207, %v1206
        %v1231 = vpack.c.b16 %v1209, %v1208
        %v1232 = vpack.c.b16 %v1211, %v1210
        %v1233 = vpack.c.b16 %v1213, %v1212
        %v1234 = vpack.c.b16 %v1215, %v1214
        %v1235 = vpack.c.b16 %v1217, %v1216
        %v1236 = vpack.c.b16 %v1219, %v1218
        %v1237 = vpack.c.b16 %v1221, %v1220
        %v1238 = vpack.c.b16 %v1223, %v1222
        %v1239 = vpack.c.b16 %v1225, %v1224
        %v1240 = vpack.c.b16 %v1227, %v1226
        %v1241 = vpack.c.b16 %v1229, %v1228
        %1254 = vst [vmem:[%s182] sm:$0xff] %v1230
        %1255 = vst [vmem:[%s182 + $0x8] sm:$0xff] %v1231
        %1256 = vst [vmem:[%s182 + $0x10] sm:$0xff] %v1232
        %1257 = vst [vmem:[%s182 + $0x18] sm:$0xff] %v1233
        %1258 = vst [vmem:[%s182 + $0x20] sm:$0xff] %v1234
        %1259 = vst [vmem:[%s182 + $0x28] sm:$0xff] %v1235
        %1260 = vst [vmem:[%s182 + $0x30] sm:$0xff] %v1236
        %1261 = vst [vmem:[%s182 + $0x38] sm:$0xff] %v1237
        %1262 = vst [vmem:[%s182 + $0x40] sm:$0xff] %v1238
        %1263 = vst [vmem:[%s182 + $0x48] sm:$0xff] %v1239
        %1264 = vst [vmem:[%s182 + $0x50] sm:$0xff] %v1240
        %1265 = vst [vmem:[%s182 + $0x58] sm:$0xff] %v1241
        %s1266 = smul.u32 4, %s17
        %p1267 = scmp.lt.s32.totalorder %s1266, 15
        %s1268 = scalar_select %p1267, %s1266, 15
        %s1269 = smul.addr %s1268, 6
        %s1270 = smul.addr %s1269, 4
        %s1271 = scalar_lea.vmem %s2, %s1270
        // Predicated region
        $region37: #{vlm_head_forward.2} parent=27 // pred_check
          %p1272 = pneg %p82
        $region38: #{vlm_head_forward.2} parent=27 // pred_check_branch
          %1274 = sbr.rel (%p1272) target = $region40
        $region39: #{vlm_head_forward.2} parent=27 // pred_region
          %s1275 = smul.u32 4, %s17
        $region40: #{vlm_head_forward.2} parent=27 // pred_fallthru
          _
      $region28: #{vlm_head_forward.2} parent=5 // pred_fallthru
        _
      %p1276 = scmp.le.s32.totalorder 2, %s12
      // Predicated region
      $region41: #{vlm_head_forward.2} parent=5 // pred_check
        %p1277 = pneg %p1276
      $region42: #{vlm_head_forward.2} parent=5 // pred_check_branch
        %1279 = sbr.rel (%p1277) target = $region44
      $region43: #{vlm_head_forward.2} parent=5 // pred_region
        %s1280 = ssub.s32 %s12, 2
        // Predicated region
        $region45: #{vlm_head_forward.2} parent=43 // pred_check
          %p1281 = pneg %p88
        $region46: #{vlm_head_forward.2} parent=43 // pred_check_branch
          %1283 = sbr.rel (%p1281) target = $region48
        $region47: #{vlm_head_forward.2} parent=43 // pred_region
          %s1284 = smul.u32 4, %s18
          %p1285 = scmp.lt.s32.totalorder %s1284, 15
          %s1286 = scalar_select %p1285, %s1284, 15
          %s1287 = smul.addr %s1286, 6
          %s1288 = smul.addr %s1287, 4
          %s1289 = scalar_lea.vmem %s2, %s1288
        $region48: #{vlm_head_forward.2} parent=43 // pred_fallthru
          _
      $region44: #{vlm_head_forward.2} parent=5 // pred_fallthru
        _
    $region6: #{vlm_head_forward.2} parent=1 // loop_footer
      %s16 = sadd.s32 1, %s12
    $region7: #{vlm_head_forward.2} parent=1 // loop_footer_branch
      %11 = sbr.rel target = $region3
    $region8: #{vlm_head_forward.2} parent=1 // loop_exit
      _
    %1290 = vsyncpa [#allocation3], 1
    %s1291 = scalar_lea.sflag [#allocation3], 1
    %1292 = vsyncpa %s1291, 1
    %1293 = vsyncpa [#allocation5], 1

</llo_original>
